<compile_context>
chip_gen: v7x
topology: tpu7x:2x2x1
jax: 0.10.0
libtpu: 0.0.40
codegen_flags: <defaults>
</compile_context>

<pallas_src>
from typing import NamedTuple

import numpy as np
import jax
import jax.numpy as jnp
from jax import lax
from jax.experimental import pallas as pl
from jax.experimental.pallas import tpu as pltpu


class UNet2DOutput(NamedTuple):
    sample: jnp.ndarray


LEAKY_SLOPE = 0.2
BN_EPS = 1e-5


def _round_up(x, m):
    return ((x + m - 1) // m) * m


# ----------------------------- layout glue (wrapper) -----------------------------
def space_to_depth_pad(a):
    """a: (B, H, W, C) -> (B, H//2 + 1, W//2 + 1, 4*C).

    Zero-pad by 1 (the conv's padding) and fold 2x2 spatial blocks into channels so
    Conv2d(k=4, s=2, p=1) becomes a 2x2 stride-1 conv with K = 4*C. Folded-channel
    order is (row-parity, col-parity, C), matching `pack_conv_weight`.
    """
    B, H, W, C = a.shape
    assert H % 2 == 0 and W % 2 == 0
    ap = jnp.pad(a, ((0, 0), (1, 1), (1, 1), (0, 0)))
    R, Cc = (H + 2) // 2, (W + 2) // 2
    x2 = ap.reshape(B, R, 2, Cc, 2, C)
    x2 = jnp.transpose(x2, (0, 1, 3, 2, 4, 5))
    return x2.reshape(B, R, Cc, 4 * C)


def pack_conv_weight(w, cout_pad):
    """PyTorch Conv2d weight (Cout, Cin, 4, 4) -> (4, 4*Cin, cout_pad), packed ONCE at init.

    Tap t = 2*dh + dw is the (4*Cin, Cout) matrix of the 2x2 sub-conv over the
    space-to-depth input; rows ordered (row-parity, col-parity, Cin).
    """
    cout, cin, kh, kw = w.shape
    assert kh == 4 and kw == 4
    wt = jnp.transpose(w, (2, 3, 1, 0))            # (kh, kw, Cin, Cout)
    wt = wt.reshape(2, 2, 2, 2, cin, cout)         # (dh, p, dw, q, Cin, Cout)
    wt = jnp.transpose(wt, (0, 2, 1, 3, 4, 5))     # (dh, dw, p, q, Cin, Cout)
    w2 = wt.reshape(4, 4 * cin, cout)
    if cout_pad > cout:
        w2 = jnp.pad(w2, ((0, 0), (0, 0), (0, cout_pad - cout)))
    return w2


# --------------------- Conv2d(k4, s2, p1, bias=False) Pallas kernel ---------------------
def conv4x4_s2_pallas(x2, w2, out_h, out_w, *, apply_leaky, emit_stats):
    """x2: (B, OH+1, OW+1, 4*Cin) f32; w2: (4, 4*Cin, Coutp) f32.

    Returns y (B, OH*OW, Coutp) and, if emit_stats, per-image channel sum and
    sum-of-squares, each (B, 1, Coutp), for the downstream BatchNorm.
    """
    B, R, C, K4 = x2.shape
    _, K4w, Coutp = w2.shape
    assert K4w == K4 and R == out_h + 1 and C == out_w + 1
    TM = out_h * out_w

    def kernel(x2_ref, w2_ref, *refs):
        if emit_stats:
            o_ref, s_ref, ss_ref, acc_ref = refs
        else:
            o_ref, acc_ref = refs
        # Four taps of the 2x2 sub-conv: contiguous shifted windows, K = 4*Cin matmuls.
        for t in range(4):
            dh, dw = t // 2, t % 2
            patch = x2_ref[:, dh:dh + out_h, dw:dw + out_w, :].reshape(TM, K4)
            contrib = jnp.dot(patch, w2_ref[t], preferred_element_type=jnp.float32)
            if t == 0:
                acc_ref[...] = contrib            # VMEM scratch accumulator
            else:
                acc_ref[...] += contrib
        y = acc_ref[...]
        if emit_stats:
            s_ref[...] = jnp.sum(y, axis=0, keepdims=True).reshape(1, 1, Coutp)
            ss_ref[...] = jnp.sum(y * y, axis=0, keepdims=True).reshape(1, 1, Coutp)
        if apply_leaky:
            y = jnp.where(y > 0, y, LEAKY_SLOPE * y)
        o_ref[...] = y.reshape(1, TM, Coutp)

    out_shape = [jax.ShapeDtypeStruct((B, TM, Coutp), jnp.float32)]
    out_specs = [pl.BlockSpec((1, TM, Coutp), lambda b: (b, 0, 0))]
    if emit_stats:
        out_shape += [jax.ShapeDtypeStruct((B, 1, Coutp), jnp.float32)] * 2
        out_specs += [pl.BlockSpec((1, 1, Coutp), lambda b: (b, 0, 0))] * 2

    flops = 2 * B * TM * (4 * K4) * Coutp
    bytes_accessed = 4 * (x2.size + w2.size + B * TM * Coutp)

    outs = pl.pallas_call(
        kernel,
        out_shape=tuple(out_shape),
        grid_spec=pltpu.PrefetchScalarGridSpec(
            num_scalar_prefetch=0,
            grid=(B,),
            in_specs=[
                pl.BlockSpec((1, R, C, K4), lambda b: (b, 0, 0, 0)),
                pl.BlockSpec((4, K4, Coutp), lambda b: (0, 0, 0)),
            ],
            out_specs=tuple(out_specs),
            scratch_shapes=[pltpu.VMEM((TM, Coutp), jnp.float32)],
        ),
        compiler_params=pltpu.CompilerParams(
            dimension_semantics=("parallel",),
            vmem_limit_bytes=32 * 1024 * 1024),
        cost_estimate=pl.CostEstimate(flops=flops, transcendentals=0,
                                      bytes_accessed=bytes_accessed),
    )(x2, w2)
    return outs if emit_stats else outs[0]


# ------------------- BatchNorm(apply) + LeakyReLU Pallas kernel -------------------
def bn_leaky_pallas(y, scale, shift):
    """v = y * scale + shift, then LeakyReLU(0.2). y: (B, TM, C); scale/shift: (1, C)."""
    B, TM, C = y.shape

    def kernel(y_ref, sc_ref, sh_ref, o_ref):
        v = y_ref[...] * sc_ref[...] + sh_ref[...]
        o_ref[...] = jnp.where(v > 0, v, LEAKY_SLOPE * v)

    return pl.pallas_call(
        kernel,
        out_shape=jax.ShapeDtypeStruct((B, TM, C), jnp.float32),
        grid_spec=pltpu.PrefetchScalarGridSpec(
            num_scalar_prefetch=0,
            grid=(B,),
            in_specs=[
                pl.BlockSpec((1, TM, C), lambda b: (b, 0, 0)),
                pl.BlockSpec((1, C), lambda b: (0, 0)),
                pl.BlockSpec((1, C), lambda b: (0, 0)),
            ],
            out_specs=pl.BlockSpec((1, TM, C), lambda b: (b, 0, 0)),
        ),
        compiler_params=pltpu.CompilerParams(dimension_semantics=("parallel",)),
    )(y, scale, shift)


# ---------------------------- parameters & forward ----------------------------
def init_dcgan_discriminator_params(key, in_channels=1, out_channels=1):
    chans = [in_channels, 128, 256, 512, out_channels]
    normalize_flags = [False, True, True, False]
    activation_flags = [True, True, True, False]
    keys = jax.random.split(key, len(chans) - 1)
    blocks = []
    for i in range(len(chans) - 1):
        cin, cout = chans[i], chans[i + 1]
        bound = 1.0 / np.sqrt(cin * 4 * 4)        # PyTorch Conv2d default init bound
        w = jax.random.uniform(keys[i], (cout, cin, 4, 4), jnp.float32, -bound, bound)
        coutp = max(128, _round_up(cout, 128))    # lane-dense / MXU-friendly Cout
        blocks.append(dict(
            w=w,                                  # kept only for the reference check
            w2=pack_conv_weight(w, coutp),        # packed once, reused every forward
            cout=cout, coutp=coutp,
            gamma=jnp.ones((cout,), jnp.float32), # BatchNorm affine defaults
            beta=jnp.zeros((cout,), jnp.float32),
            normalize=normalize_flags[i],
            activation=activation_flags[i],
        ))
    return dict(blocks=blocks)


def dcgan_discriminator_forward(params, img_batch, timesteps=None):
    """Mirrors DCGANDiscriminator.forward; `timesteps` is unused (as in the reference)."""
    del timesteps
    a = jnp.transpose(img_batch, (0, 2, 3, 1)).astype(jnp.float32)   # NCHW -> NHWC
    B = a.shape[0]
    for blk in params["blocks"]:
        H, W = a.shape[1], a.shape[2]
        OH, OW = H // 2, W // 2
        x2 = space_to_depth_pad(a)
        if blk["normalize"]:
            y, s, ss = conv4x4_s2_pallas(x2, blk["w2"], OH, OW,
                                         apply_leaky=False, emit_stats=True)
            # BatchNorm (training-mode) finalize from tiny per-image partial sums.
            n = B * OH * OW
            mean = jnp.sum(s, axis=0) / n                       # (1, C)
            var = jnp.sum(ss, axis=0) / n - mean * mean         # biased variance
            inv = lax.rsqrt(var + BN_EPS)
            scale = blk["gamma"].reshape(1, -1) * inv
            shift = blk["beta"].reshape(1, -1) - mean * scale
            y = bn_leaky_pallas(y, scale, shift)
        else:
            y = conv4x4_s2_pallas(x2, blk["w2"], OH, OW,
                                  apply_leaky=blk["activation"], emit_stats=False)
        a = y[:, :, :blk["cout"]].reshape(B, OH, OW, blk["cout"])
    sample = jnp.transpose(a, (0, 3, 1, 2))                      # NHWC -> NCHW
    return UNet2DOutput(sample=sample)


# ------------------------------ pure-JAX reference ------------------------------
def reference_forward(params, img_batch):
    x = jnp.transpose(img_batch, (0, 2, 3, 1)).astype(jnp.float32)
    for blk in params["blocks"]:
        k = jnp.transpose(blk["w"], (2, 3, 1, 0))                # OIHW -> HWIO
        y = lax.conv_general_dilated(
            x, k, window_strides=(2, 2), padding=((1, 1), (1, 1)),
            dimension_numbers=("NHWC", "HWIO", "NHWC"),
            precision=lax.Precision.HIGHEST)
        if blk["normalize"]:
            mean = jnp.mean(y, axis=(0, 1, 2), keepdims=True)
            var = jnp.mean((y - mean) ** 2, axis=(0, 1, 2), keepdims=True)
            y = (y - mean) * lax.rsqrt(var + BN_EPS)
            y = y * blk["gamma"].reshape(1, 1, 1, -1) + blk["beta"].reshape(1, 1, 1, -1)
        if blk["activation"]:
            y = jnp.where(y > 0, y, LEAKY_SLOPE * y)
        x = y
    return jnp.transpose(x, (0, 3, 1, 2))


if __name__ == "__main__":
    in_channels, out_channels = 1, 1
    batch, spatial = 2, 32          # 32x32 input -> four stride-2 convs -> 2x2 output
    key = jax.random.PRNGKey(0)
    pkey, xkey = jax.random.split(key)
    params = init_dcgan_discriminator_params(pkey, in_channels, out_channels)
    img = jax.random.normal(xkey, (batch, in_channels, spatial, spatial), jnp.float32)
    timesteps = jnp.zeros((batch,), jnp.int32)    # unused, mirrors the torch signature

    out = dcgan_discriminator_forward(params, img, timesteps)
    sample = jax.block_until_ready(out.sample)
    assert sample.shape == (batch, out_channels, spatial // 16, spatial // 16)
    assert bool(jnp.all(jnp.isfinite(sample)))

    ref = jax.block_until_ready(reference_forward(params, img))
    np.testing.assert_allclose(np.asarray(sample), np.asarray(ref), rtol=5e-2, atol=5e-2)
    print("KERNEL_OK")
</pallas_src>

<mosaic_0001>
module attributes {stable_mosaic.version = 11 : i64} {
  func.func @kernel(%arg0: i32, %arg1: memref<1x17x17x4xf32, #tpu.memory_space<vmem>>, %arg2: memref<4x4x128xf32, #tpu.memory_space<vmem>>, %arg3: memref<1x256x128xf32, #tpu.memory_space<vmem>>, %arg4: memref<256x128xf32, #tpu.memory_space<vmem>>) attributes {dimension_semantics = [#tpu.dimension_semantics<parallel>], iteration_bounds = array<i64: 2>, scalar_prefetch = 0 : i64, scratch_operands = 1 : i64, tpu.core_type = #tpu.core_type<tc>, window_params = [{transform_indices = @transform_0, window_bounds = array<i64: 1, 17, 17, 4>}, {pipeline_mode = #tpu.pipeline_mode<synchronous>, transform_indices = @transform_1, window_bounds = array<i64: 4, 4, 128>}, {transform_indices = @transform_2, window_bounds = array<i64: 1, 256, 128>}]} {
    %c0 = arith.constant 0 : index
    %c0_0 = arith.constant 0 : index
    %c0_1 = arith.constant 0 : index
    %c0_2 = arith.constant 0 : index
    %0 = vector.load %arg1[%c0, %c0_0, %c0_1, %c0_2] : memref<1x17x17x4xf32, #tpu.memory_space<vmem>>, vector<1x16x16x4xf32>
    %1 = vector.shape_cast %0 : vector<1x16x16x4xf32> to vector<256x4xf32>
    %c0_3 = arith.constant 0 : index
    %c0_4 = arith.constant 0 : index
    %c0_5 = arith.constant 0 : index
    %2 = vector.load %arg2[%c0_3, %c0_4, %c0_5] : memref<4x4x128xf32, #tpu.memory_space<vmem>>, vector<1x4x128xf32>
    %3 = vector.shape_cast %2 : vector<1x4x128xf32> to vector<4x128xf32>
    %cst = arith.constant dense<0.000000e+00> : vector<256x128xf32>
    %4 = tpu.matmul %1, %3, %cst {dimension_numbers = #tpu.dot_dimension_numbers<[1], [0], [0], [1], [0, 0, 1, 1], [], []>} : vector<256x4xf32>, vector<4x128xf32>, vector<256x128xf32> -> vector<256x128xf32>
    %c0_6 = arith.constant 0 : index
    %c0_7 = arith.constant 0 : index
    %5 = vector.load %arg4[%c0_6, %c0_7] : memref<256x128xf32, #tpu.memory_space<vmem>>, vector<256x128xf32>
    tpu.vector_store %arg4[%c0_6, %c0_7], %4 {strides = array<i32>} : memref<256x128xf32, #tpu.memory_space<vmem>>, vector<256x128xf32>,
    %c0_8 = arith.constant 0 : index
    %c0_9 = arith.constant 0 : index
    %c1 = arith.constant 1 : index
    %c0_10 = arith.constant 0 : index
    %6 = vector.load %arg1[%c0_8, %c0_9, %c1, %c0_10] : memref<1x17x17x4xf32, #tpu.memory_space<vmem>>, vector<1x16x16x4xf32>
    %7 = vector.shape_cast %6 : vector<1x16x16x4xf32> to vector<256x4xf32>
    %c1_11 = arith.constant 1 : index
    %c0_12 = arith.constant 0 : index
    %c0_13 = arith.constant 0 : index
    %8 = vector.load %arg2[%c1_11, %c0_12, %c0_13] : memref<4x4x128xf32, #tpu.memory_space<vmem>>, vector<1x4x128xf32>
    %9 = vector.shape_cast %8 : vector<1x4x128xf32> to vector<4x128xf32>
    %cst_14 = arith.constant dense<0.000000e+00> : vector<256x128xf32>
    %10 = tpu.matmul %7, %9, %cst_14 {dimension_numbers = #tpu.dot_dimension_numbers<[1], [0], [0], [1], [0, 0, 1, 1], [], []>} : vector<256x4xf32>, vector<4x128xf32>, vector<256x128xf32> -> vector<256x128xf32>
    %c0_15 = arith.constant 0 : index
    %c0_16 = arith.constant 0 : index
    %11 = vector.load %arg4[%c0_15, %c0_16] : memref<256x128xf32, #tpu.memory_space<vmem>>, vector<256x128xf32>
    %12 = arith.addf %11, %10 : vector<256x128xf32>
    %c0_17 = arith.constant 0 : index
    %c0_18 = arith.constant 0 : index
    %13 = vector.load %arg4[%c0_17, %c0_18] : memref<256x128xf32, #tpu.memory_space<vmem>>, vector<256x128xf32>
    tpu.vector_store %arg4[%c0_17, %c0_18], %12 {strides = array<i32>} : memref<256x128xf32, #tpu.memory_space<vmem>>, vector<256x128xf32>,
    %c0_19 = arith.constant 0 : index
    %c1_20 = arith.constant 1 : index
    %c0_21 = arith.constant 0 : index
    %c0_22 = arith.constant 0 : index
    %14 = vector.load %arg1[%c0_19, %c1_20, %c0_21, %c0_22] : memref<1x17x17x4xf32, #tpu.memory_space<vmem>>, vector<1x16x16x4xf32>
    %15 = vector.shape_cast %14 : vector<1x16x16x4xf32> to vector<256x4xf32>
    %c2 = arith.constant 2 : index
    %c0_23 = arith.constant 0 : index
    %c0_24 = arith.constant 0 : index
    %16 = vector.load %arg2[%c2, %c0_23, %c0_24] : memref<4x4x128xf32, #tpu.memory_space<vmem>>, vector<1x4x128xf32>
    %17 = vector.shape_cast %16 : vector<1x4x128xf32> to vector<4x128xf32>
    %cst_25 = arith.constant dense<0.000000e+00> : vector<256x128xf32>
    %18 = tpu.matmul %15, %17, %cst_25 {dimension_numbers = #tpu.dot_dimension_numbers<[1], [0], [0], [1], [0, 0, 1, 1], [], []>} : vector<256x4xf32>, vector<4x128xf32>, vector<256x128xf32> -> vector<256x128xf32>
    %c0_26 = arith.constant 0 : index
    %c0_27 = arith.constant 0 : index
    %19 = vector.load %arg4[%c0_26, %c0_27] : memref<256x128xf32, #tpu.memory_space<vmem>>, vector<256x128xf32>
    %20 = arith.addf %19, %18 : vector<256x128xf32>
    %c0_28 = arith.constant 0 : index
    %c0_29 = arith.constant 0 : index
    %21 = vector.load %arg4[%c0_28, %c0_29] : memref<256x128xf32, #tpu.memory_space<vmem>>, vector<256x128xf32>
    tpu.vector_store %arg4[%c0_28, %c0_29], %20 {strides = array<i32>} : memref<256x128xf32, #tpu.memory_space<vmem>>, vector<256x128xf32>,
    %c0_30 = arith.constant 0 : index
    %c1_31 = arith.constant 1 : index
    %c1_32 = arith.constant 1 : index
    %c0_33 = arith.constant 0 : index
    %22 = vector.load %arg1[%c0_30, %c1_31, %c1_32, %c0_33] : memref<1x17x17x4xf32, #tpu.memory_space<vmem>>, vector<1x16x16x4xf32>
    %23 = vector.shape_cast %22 : vector<1x16x16x4xf32> to vector<256x4xf32>
    %c3 = arith.constant 3 : index
    %c0_34 = arith.constant 0 : index
    %c0_35 = arith.constant 0 : index
    %24 = vector.load %arg2[%c3, %c0_34, %c0_35] : memref<4x4x128xf32, #tpu.memory_space<vmem>>, vector<1x4x128xf32>
    %25 = vector.shape_cast %24 : vector<1x4x128xf32> to vector<4x128xf32>
    %cst_36 = arith.constant dense<0.000000e+00> : vector<256x128xf32>
    %26 = tpu.matmul %23, %25, %cst_36 {dimension_numbers = #tpu.dot_dimension_numbers<[1], [0], [0], [1], [0, 0, 1, 1], [], []>} : vector<256x4xf32>, vector<4x128xf32>, vector<256x128xf32> -> vector<256x128xf32>
    %c0_37 = arith.constant 0 : index
    %c0_38 = arith.constant 0 : index
    %27 = vector.load %arg4[%c0_37, %c0_38] : memref<256x128xf32, #tpu.memory_space<vmem>>, vector<256x128xf32>
    %28 = arith.addf %27, %26 : vector<256x128xf32>
    %c0_39 = arith.constant 0 : index
    %c0_40 = arith.constant 0 : index
    %29 = vector.load %arg4[%c0_39, %c0_40] : memref<256x128xf32, #tpu.memory_space<vmem>>, vector<256x128xf32>
    tpu.vector_store %arg4[%c0_39, %c0_40], %28 {strides = array<i32>} : memref<256x128xf32, #tpu.memory_space<vmem>>, vector<256x128xf32>,
    %c0_41 = arith.constant 0 : index
    %c0_42 = arith.constant 0 : index
    %30 = vector.load %arg4[%c0_41, %c0_42] : memref<256x128xf32, #tpu.memory_space<vmem>>, vector<256x128xf32>
    %cst_43 = arith.constant 0.000000e+00 : f32
    %31 = vector.broadcast %cst_43 : f32 to vector<256x128xf32>
    %32 = arith.cmpf ogt, %30, %31 : vector<256x128xf32>
    %cst_44 = arith.constant 2.000000e-01 : f32
    %33 = vector.broadcast %cst_44 : f32 to vector<256x128xf32>
    %34 = arith.mulf %33, %30 : vector<256x128xf32>
    %35 = arith.select %32, %30, %34 : vector<256x128xi1>, vector<256x128xf32>
    %36 = vector.shape_cast %35 : vector<256x128xf32> to vector<1x256x128xf32>
    %c0_45 = arith.constant 0 : index
    %c0_46 = arith.constant 0 : index
    %c0_47 = arith.constant 0 : index
    %37 = vector.load %arg3[%c0_45, %c0_46, %c0_47] : memref<1x256x128xf32, #tpu.memory_space<vmem>>, vector<1x256x128xf32>
    tpu.vector_store %arg3[%c0_45, %c0_46, %c0_47], %36 {strides = array<i32>} : memref<1x256x128xf32, #tpu.memory_space<vmem>>, vector<1x256x128xf32>,
    return
  }
  func.func @transform_0(%arg0: i32) -> (i32, i32, i32, i32) {
    %c0_i32 = arith.constant 0 : i32
    %c0_i32_0 = arith.constant 0 : i32
    %c0_i32_1 = arith.constant 0 : i32
    %c0_i32_2 = arith.constant 0 : i32
    return %arg0, %c0_i32, %c0_i32_0, %c0_i32_1 : i32, i32, i32, i32
  }
  func.func @transform_1(%arg0: i32) -> (i32, i32, i32) {
    %c0_i32 = arith.constant 0 : i32
    %c0_i32_0 = arith.constant 0 : i32
    %c0_i32_1 = arith.constant 0 : i32
    %c0_i32_2 = arith.constant 0 : i32
    return %c0_i32, %c0_i32_0, %c0_i32_1 : i32, i32, i32
  }
  func.func @transform_2(%arg0: i32) -> (i32, i32, i32) {
    %c0_i32 = arith.constant 0 : i32
    %c0_i32_0 = arith.constant 0 : i32
    %c0_i32_1 = arith.constant 0 : i32
    return %arg0, %c0_i32, %c0_i32_0 : i32, i32, i32
  }
}

</mosaic_0001>

<llo_original>
// kernel: tpu_custom_call.1
$region0: #{tpu_custom_call.1}
  #allocation0 [shape = 'u32[]', space=smem, size = 0x4, offset = 0x4, fixed_abs, tag = 'smem constant byte address 0x4 - core index']
  #allocation1 [shape = 'u32[144,128]{1,0:T(1,128)}', space=vmem, size = 0x12000, scoped, tag = 'internal scratch']
  #allocation2 [shape = 'f32[256,128]{1,0:T(8,128)}', space=vmem, size = 0x20000, scoped, tag = 'scratch operand']
  %s0 = inlined_call_operand.vmem [shape: f32[2,17,17,4], index: 0, kind: input, shape index: {}]
  %s1 = inlined_call_operand.vmem [shape: f32[4,4,128], index: 1, kind: input, shape index: {}]
  %s2 = inlined_call_operand.hbm [shape: f32[2,256,128], index: 2, kind: output, shape index: {}]
  %s3 = sld [smem:[#allocation0]]
  $region41: #{tpu_custom_call.1} parent=0
    _
  %s5 = ssub.s32 1, %s3
  %s6 = scalar_select 0, %s5, %s3
  $region1: #{tpu_custom_call.1} parent=0
    #allocation3 [shape = 'u8[262144]{0}', space=vmem, size = 0x40000, scoped, tag = 'output window, operand 0']
    #allocation4 [shape = 's32[2]{0}', space=sflag, size = 0x8, scoped, tag = 'scoped memory for tpu_custom_call.1']
    %7 = vsyncpa [#allocation4], 0
    %s8 = scalar_lea.sflag [#allocation4], 1
    %9 = vsyncpa %s8, 0
    loop: start=0, step=1, limit=4
    $region2: #{tpu_custom_call.1} parent=1 // loop_pre_header
      _
    $region3: #{tpu_custom_call.1} parent=1 // loop_header
      %s11 = sphi 0, %s15
      %p12 = scmp.ge.s32.totalorder %s11, 4
      %s21 = sphi 0, %s23
      %s24 = sphi 0, %s21
      %s25 = sphi 0, %s24
      %s41 = sphi 0, %s25
      %s45 = sphi 0, %s45
      %s47 = sphi 0, %s45
      %s48 = sphi 0, %s47
      %s62 = sphi 0, %s48
      %s68 = sphi 0, %s70
      %s71 = sphi 0, %s68
      %s72 = sphi 0, %s71
      %s88 = sphi 0, %s72
    $region4: #{tpu_custom_call.1} parent=1 // loop_header_branch
      %14 = sbr.rel (%p12) target = $region8
    $region5: #{tpu_custom_call.1} parent=1 // loop_body
      %s16 = ssub.s32 %s11, 1
      %s17 = ssub.s32 %s11, 2
      %s18 = sadd.s32 %s11, 1
      %s19 = ssub.s32 %s11, %s18
      %p20 = scmp.eq.s32.totalorder %s19, 0
      %s22 = sadd.s32 %s21, 1
      %s23 = scalar_select %p20, %s21, %s22
      %p26 = pneg %p20
      %p27 = scmp.eq.s32.totalorder %s11, 1
      %p28 = por %p26, %p27
      %p29 = scmp.ne.s32.totalorder %s21, %s24
      %p30 = scmp.eq.s32.totalorder %s11, 0
      %p31 = por %p29, %p30
      %p32 = scmp.ne.s32.totalorder %s21, %s24
      %p33 = scmp.eq.s32.totalorder %s16, 1
      %p34 = por %p32, %p33
      %p35 = scmp.ne.s32.totalorder %s24, %s25
      %p36 = scmp.eq.s32.totalorder %s16, 0
      %p37 = por %p35, %p36
      %p38 = scmp.ne.s32.totalorder %s24, %s25
      %p39 = scmp.eq.s32.totalorder %s17, 1
      %p40 = por %p38, %p39
      %p42 = scmp.ne.s32.totalorder %s25, %s41
      %p43 = scmp.eq.s32.totalorder %s17, 0
      %p44 = por %p42, %p43
      %s46 = sadd.s32 %s45, 1
      %p49 = scmp.eq.s32.totalorder %s11, 1
      %p50 = scmp.ne.s32.totalorder %s45, %s47
      %p51 = scmp.eq.s32.totalorder %s11, 0
      %p52 = por %p50, %p51
      %p53 = scmp.ne.s32.totalorder %s45, %s47
      %p54 = scmp.eq.s32.totalorder %s16, 1
      %p55 = por %p53, %p54
      %p56 = scmp.ne.s32.totalorder %s47, %s48
      %p57 = scmp.eq.s32.totalorder %s16, 0
      %p58 = por %p56, %p57
      %p59 = scmp.ne.s32.totalorder %s47, %s48
      %p60 = scmp.eq.s32.totalorder %s17, 1
      %p61 = por %p59, %p60
      %p63 = scmp.ne.s32.totalorder %s48, %s62
      %p64 = scmp.eq.s32.totalorder %s17, 0
      %p65 = por %p63, %p64
      %s66 = ssub.s32 %s11, %s18
      %p67 = scmp.eq.s32.totalorder %s66, 0
      %s69 = sadd.s32 %s68, 1
      %s70 = scalar_select %p67, %s68, %s69
      %p73 = pneg %p67
      %p74 = scmp.eq.s32.totalorder %s11, 1
      %p75 = por %p73, %p74
      %p76 = scmp.ne.s32.totalorder %s68, %s71
      %p77 = scmp.eq.s32.totalorder %s11, 0
      %p78 = por %p76, %p77
      %p79 = scmp.ne.s32.totalorder %s68, %s71
      %p80 = scmp.eq.s32.totalorder %s16, 1
      %p81 = por %p79, %p80
      %p82 = scmp.ne.s32.totalorder %s71, %s72
      %p83 = scmp.eq.s32.totalorder %s16, 0
      %p84 = por %p82, %p83
      %p85 = scmp.ne.s32.totalorder %s71, %s72
      %p86 = scmp.eq.s32.totalorder %s17, 1
      %p87 = por %p85, %p86
      %p89 = scmp.ne.s32.totalorder %s72, %s88
      %p90 = scmp.eq.s32.totalorder %s17, 0
      %p91 = por %p89, %p90
      %p92 = scmp.le.s32.totalorder 1, %s11
      %p93 = scmp.lt.s32.totalorder %s11, 3
      %p94 = pnand %p92, %p93
      %p95 = pneg %p94
      // Predicated region
      $region9: #{tpu_custom_call.1} parent=5 // pred_check
        _
      $region10: #{tpu_custom_call.1} parent=5 // pred_check_branch
        %97 = sbr.rel (%p94) target = $region12
      $region11: #{tpu_custom_call.1} parent=5 // pred_region
        %s98 = ssub.s32 %s11, 1
        // Predicated region
        $region13: #{tpu_custom_call.1} parent=11 // pred_check
          %p99 = pneg %p58
        $region14: #{tpu_custom_call.1} parent=11 // pred_check_branch
          %101 = sbr.rel (%p99) target = $region16
        $region15: #{tpu_custom_call.1} parent=11 // pred_region
          _
        $region16: #{tpu_custom_call.1} parent=11 // pred_fallthru
          _
      $region12: #{tpu_custom_call.1} parent=5 // pred_fallthru
        _
      %p102 = scmp.lt.s32.totalorder %s11, 2
      // Predicated region
      $region17: #{tpu_custom_call.1} parent=5 // pred_check
        %p103 = pneg %p102
      $region18: #{tpu_custom_call.1} parent=5 // pred_check_branch
        %105 = sbr.rel (%p103) target = $region20
      $region19: #{tpu_custom_call.1} parent=5 // pred_region
        // Predicated region
        $region21: #{tpu_custom_call.1} parent=19 // pred_check
          %p106 = pneg %p31
        $region22: #{tpu_custom_call.1} parent=19 // pred_check_branch
          %108 = sbr.rel (%p106) target = $region24
        $region23: #{tpu_custom_call.1} parent=19 // pred_region
          %p109 = scmp.lt.s32.totalorder %s11, 1
          %s110 = scalar_select %p109, %s11, 1
          %s111 = smul.addr %s110, 51
          %s112 = smul.addr %s111, 8
          %s113 = scalar_lea.vmem %s0, %s112
        $region24: #{tpu_custom_call.1} parent=19 // pred_fallthru
          _
      $region20: #{tpu_custom_call.1} parent=5 // pred_fallthru
        _
      %p114 = scmp.le.s32.totalorder 1, %s11
      %p115 = scmp.lt.s32.totalorder %s11, 3
      %p116 = pnand %p114, %p115
      %p117 = pneg %p116
      // Predicated region
      $region25: #{tpu_custom_call.1} parent=5 // pred_check
        _
      $region26: #{tpu_custom_call.1} parent=5 // pred_check_branch
        %119 = sbr.rel (%p116) target = $region28
      $region27: #{tpu_custom_call.1} parent=5 // pred_region
        %s120 = ssub.s32 %s11, 1
        %p121 = scmp.lt.s32.totalorder %s16, 1
        %s122 = scalar_select %p121, %s16, 1
        %s123 = smul.addr %s122, 51
        %s124 = smul.addr %s123, 8
        %s125 = scalar_lea.vmem %s0, %s124
        %p126 = pneg %p37
        %p127 = pneg %p34
        %p128 = pneg %p58
        %p129 = pneg %p55
        %p130 = pneg %p84
        %p131 = pneg %p81
        %s132 = sand.u32 %s71, 1
        %s133 = scalar_lea.sflag [#allocation4], %s132
        %s134 = sand.u32 %s71, 1
        %s135 = smul.addr %s134, 256
        %s136 = scalar_lea.vmem [#allocation3], %s135
        %p137 = scmp.lt.s32.totalorder %s16, 1
        %s138 = scalar_select %p137, %s16, 1
        %s139 = smul.addr %s138, 51
        %s140 = smul.addr %s139, 8
        %s141 = scalar_lea.vmem %s0, %s140
        %v142 = vld [vmem:[%s141] sm:$0xff]
        %v143 = vld [vmem:[%s141 + $0x8] sm:$0xff]
        %v144 = vld [vmem:[%s141 + $0x18] sm:$0xff]
        %v145 = vld [vmem:[%s141 + $0x20] sm:$0xff]
        %v146 = vld [vmem:[%s141 + $0x30] sm:$0xff]
        %v147 = vld [vmem:[%s141 + $0x38] sm:$0xff]
        %v148 = vld [vmem:[%s141 + $0x48] sm:$0xff]
        %v149 = vld [vmem:[%s141 + $0x50] sm:$0xff]
        %v150 = vld [vmem:[%s141 + $0x60] sm:$0xff]
        %v151 = vld [vmem:[%s141 + $0x68] sm:$0xff]
        %v152 = vld [vmem:[%s141 + $0x78] sm:$0xff]
        %v153 = vld [vmem:[%s141 + $0x80] sm:$0xff]
        %v154 = vld [vmem:[%s141 + $0x90] sm:$0xff]
        %v155 = vld [vmem:[%s141 + $0x98] sm:$0xff]
        %v156 = vld [vmem:[%s141 + $0xa8] sm:$0xff]
        %v157 = vld [vmem:[%s141 + $0xb0] sm:$0xff]
        %v158 = vld [vmem:[%s141 + $0xc0] sm:$0xff]
        %v159 = vld [vmem:[%s141 + $0xc8] sm:$0xff]
        %v160 = vld [vmem:[%s141 + $0xd8] sm:$0xff]
        %v161 = vld [vmem:[%s141 + $0xe0] sm:$0xff]
        %v162 = vld [vmem:[%s141 + $0xf0] sm:$0xff]
        %v163 = vld [vmem:[%s141 + $0xf8] sm:$0xff]
        %v164 = vld [vmem:[%s141 + $0x108] sm:$0xff]
        %v165 = vld [vmem:[%s141 + $0x110] sm:$0xff]
        %v166 = vld [vmem:[%s141 + $0x120] sm:$0xff]
        %v167 = vld [vmem:[%s141 + $0x128] sm:$0xff]
        %v168 = vld [vmem:[%s141 + $0x138] sm:$0xff]
        %v169 = vld [vmem:[%s141 + $0x140] sm:$0xff]
        %v170 = vld [vmem:[%s141 + $0x150] sm:$0xff]
        %v171 = vld [vmem:[%s141 + $0x158] sm:$0xff]
        %v172 = vld [vmem:[%s141 + $0x168] sm:$0xff]
        %v173 = vld [vmem:[%s141 + $0x170] sm:$0xff]
        %v174 = vld [vmem:[%s1] sm:$0xf]
        %vm175 = vcmask 31744
        %v177 = vsel %vm175, %v142, 0
        %v180 = vsel %vm175, %v143, 0
        %v183 = vsel %vm175, %v144, 0
        %v186 = vsel %vm175, %v145, 0
        %v189 = vsel %vm175, %v146, 0
        %v192 = vsel %vm175, %v147, 0
        %v195 = vsel %vm175, %v148, 0
        %v198 = vsel %vm175, %v149, 0
        %v201 = vsel %vm175, %v150, 0
        %v204 = vsel %vm175, %v151, 0
        %v207 = vsel %vm175, %v152, 0
        %v210 = vsel %vm175, %v153, 0
        %v213 = vsel %vm175, %v154, 0
        %v216 = vsel %vm175, %v155, 0
        %v219 = vsel %vm175, %v156, 0
        %v222 = vsel %vm175, %v157, 0
        %v225 = vsel %vm175, %v158, 0
        %v228 = vsel %vm175, %v159, 0
        %v231 = vsel %vm175, %v160, 0
        %v234 = vsel %vm175, %v161, 0
        %v237 = vsel %vm175, %v162, 0
        %v240 = vsel %vm175, %v163, 0
        %v243 = vsel %vm175, %v164, 0
        %v246 = vsel %vm175, %v165, 0
        %v249 = vsel %vm175, %v166, 0
        %v252 = vsel %vm175, %v167, 0
        %v255 = vsel %vm175, %v168, 0
        %v258 = vsel %vm175, %v169, 0
        %v261 = vsel %vm175, %v170, 0
        %v264 = vsel %vm175, %v171, 0
        %v267 = vsel %vm175, %v172, 0
        %v270 = vsel %vm175, %v173, 0
        %vm272 = vcmask 1043456
        %v274 = vsel %vm272, %v174, 0
        %276 = vmatprep.subr.mxu0 0.0
        %277 = vmatpush1.msra.mxu0 %v274
        %278 = vmatprep.subr.mxu0 0.0
        %279 = vmatpush1.msra.mxu0 0.0
        %280 = vmatprep.subr.mxu0 0.0
        %281 = vmatpush1.msra.mxu0 0.0
        %282 = vmatprep.subr.mxu0 0.0
        %283 = vmatpush1.msra.mxu0 0.0
        %284 = vmatprep.subr.mxu0 0.0
        %285 = vmatpush1.msra.mxu0 0.0
        %286 = vmatprep.subr.mxu0 0.0
        %287 = vmatpush1.msra.mxu0 0.0
        %288 = vmatprep.subr.mxu0 0.0
        %289 = vmatpush1.msra.mxu0 0.0
        %290 = vmatprep.subr.mxu0 0.0
        %291 = vmatpush1.msra.mxu0 0.0
        %292 = vmatprep.subr.mxu0 0.0
        %293 = vmatpush1.msra.mxu0 0.0
        %294 = vmatprep.subr.mxu0 0.0
        %295 = vmatpush1.msra.mxu0 0.0
        %296 = vmatprep.subr.mxu0 0.0
        %297 = vmatpush1.msra.mxu0 0.0
        %298 = vmatprep.subr.mxu0 0.0
        %299 = vmatpush1.msra.mxu0 0.0
        %300 = vmatprep.subr.mxu0 0.0
        %301 = vmatpush1.msra.mxu0 0.0
        %302 = vmatprep.subr.mxu0 0.0
        %303 = vmatpush1.msra.mxu0 0.0
        %304 = vmatprep.subr.mxu0 0.0
        %305 = vmatpush1.msra.mxu0 0.0
        %306 = vmatprep.subr.mxu0 0.0
        %307 = vmatpush1.msra.mxu0 0.0
        %308 = vmatprep.subr.mxu0 0.0
        %309 = vmatpush1.msra.mxu0 0.0
        %310 = vmatprep.subr.mxu0 0.0
        %311 = vmatpush1.msra.mxu0 0.0
        %312 = vmatprep.subr.mxu0 0.0
        %313 = vmatpush1.msra.mxu0 0.0
        %314 = vmatprep.subr.mxu0 0.0
        %315 = vmatpush1.msra.mxu0 0.0
        %316 = vmatprep.subr.mxu0 0.0
        %317 = vmatpush1.msra.mxu0 0.0
        %318 = vmatprep.subr.mxu0 0.0
        %319 = vmatpush1.msra.mxu0 0.0
        %320 = vmatprep.subr.mxu0 0.0
        %321 = vmatpush1.msra.mxu0 0.0
        %322 = vmatprep.subr.mxu0 0.0
        %323 = vmatpush1.msra.mxu0 0.0
        %324 = vmatprep.subr.mxu0 0.0
        %325 = vmatpush1.msra.mxu0 0.0
        %326 = vmatprep.subr.mxu0 0.0
        %327 = vmatpush1.msra.mxu0 0.0
        %328 = vmatprep.subr.mxu0 0.0
        %329 = vmatpush1.msra.mxu0 0.0
        %330 = vmatprep.subr.mxu0 0.0
        %331 = vmatpush1.msra.mxu0 0.0
        %332 = vmatprep.subr.mxu0 0.0
        %333 = vmatpush1.msra.mxu0 0.0
        %334 = vmatprep.subr.mxu0 0.0
        %335 = vmatpush1.msra.mxu0 0.0
        %336 = vmatprep.subr.mxu0 0.0
        %337 = vmatpush1.msra.mxu0 0.0
        %338 = vmatprep.subr.mxu0 0.0
        %339 = vmatpush1.msra.mxu0 0.0
        %340 = vmatprep.mubr.f32.mxu0 0.0
        %341 = vmatmul.mubr.f32.gmra.mrb[0].mxu0 %v177
        %v342 = vpop.f32.mrb[0].mxu0
        %v343 = vadd.f32 0.0, %v342
        %v344 = vpop.f32.mrb[0].mxu0
        %345 = vmatprep.mubr.f32.mxu0 0.0
        %346 = vmatmul.mubr.f32.gmra.mrb[0].mxu0 %v180
        %v347 = vpop.f32.mrb[0].mxu0
        %v348 = vadd.f32 0.0, %v347
        %v349 = vpop.f32.mrb[0].mxu0
        %350 = vmatprep.mubr.f32.mxu0 0.0
        %351 = vmatmul.mubr.f32.gmra.mrb[0].mxu0 %v183
        %v352 = vpop.f32.mrb[0].mxu0
        %v353 = vadd.f32 0.0, %v352
        %v354 = vpop.f32.mrb[0].mxu0
        %355 = vmatprep.mubr.f32.mxu0 0.0
        %356 = vmatmul.mubr.f32.gmra.mrb[0].mxu0 %v186
        %v357 = vpop.f32.mrb[0].mxu0
        %v358 = vadd.f32 0.0, %v357
        %v359 = vpop.f32.mrb[0].mxu0
        %360 = vmatprep.mubr.f32.mxu0 0.0
        %361 = vmatmul.mubr.f32.gmra.mrb[0].mxu0 %v189
        %v362 = vpop.f32.mrb[0].mxu0
        %v363 = vadd.f32 0.0, %v362
        %v364 = vpop.f32.mrb[0].mxu0
        %365 = vmatprep.mubr.f32.mxu0 0.0
        %366 = vmatmul.mubr.f32.gmra.mrb[0].mxu0 %v192
        %v367 = vpop.f32.mrb[0].mxu0
        %v368 = vadd.f32 0.0, %v367
        %v369 = vpop.f32.mrb[0].mxu0
        %370 = vmatprep.mubr.f32.mxu0 0.0
        %371 = vmatmul.mubr.f32.gmra.mrb[0].mxu0 %v195
        %v372 = vpop.f32.mrb[0].mxu0
        %v373 = vadd.f32 0.0, %v372
        %v374 = vpop.f32.mrb[0].mxu0
        %375 = vmatprep.mubr.f32.mxu0 0.0
        %376 = vmatmul.mubr.f32.gmra.mrb[0].mxu0 %v198
        %v377 = vpop.f32.mrb[0].mxu0
        %v378 = vadd.f32 0.0, %v377
        %v379 = vpop.f32.mrb[0].mxu0
        %380 = vmatprep.mubr.f32.mxu0 0.0
        %381 = vmatmul.mubr.f32.gmra.mrb[0].mxu0 %v201
        %v382 = vpop.f32.mrb[0].mxu0
        %v383 = vadd.f32 0.0, %v382
        %v384 = vpop.f32.mrb[0].mxu0
        %385 = vmatprep.mubr.f32.mxu0 0.0
        %386 = vmatmul.mubr.f32.gmra.mrb[0].mxu0 %v204
        %v387 = vpop.f32.mrb[0].mxu0
        %v388 = vadd.f32 0.0, %v387
        %v389 = vpop.f32.mrb[0].mxu0
        %390 = vmatprep.mubr.f32.mxu0 0.0
        %391 = vmatmul.mubr.f32.gmra.mrb[0].mxu0 %v207
        %v392 = vpop.f32.mrb[0].mxu0
        %v393 = vadd.f32 0.0, %v392
        %v394 = vpop.f32.mrb[0].mxu0
        %395 = vmatprep.mubr.f32.mxu0 0.0
        %396 = vmatmul.mubr.f32.gmra.mrb[0].mxu0 %v210
        %v397 = vpop.f32.mrb[0].mxu0
        %v398 = vadd.f32 0.0, %v397
        %v399 = vpop.f32.mrb[0].mxu0
        %400 = vmatprep.mubr.f32.mxu0 0.0
        %401 = vmatmul.mubr.f32.gmra.mrb[0].mxu0 %v213
        %v402 = vpop.f32.mrb[0].mxu0
        %v403 = vadd.f32 0.0, %v402
        %v404 = vpop.f32.mrb[0].mxu0
        %405 = vmatprep.mubr.f32.mxu0 0.0
        %406 = vmatmul.mubr.f32.gmra.mrb[0].mxu0 %v216
        %v407 = vpop.f32.mrb[0].mxu0
        %v408 = vadd.f32 0.0, %v407
        %v409 = vpop.f32.mrb[0].mxu0
        %410 = vmatprep.mubr.f32.mxu0 0.0
        %411 = vmatmul.mubr.f32.gmra.mrb[0].mxu0 %v219
        %v412 = vpop.f32.mrb[0].mxu0
        %v413 = vadd.f32 0.0, %v412
        %v414 = vpop.f32.mrb[0].mxu0
        %415 = vmatprep.mubr.f32.mxu0 0.0
        %416 = vmatmul.mubr.f32.gmra.mrb[0].mxu0 %v222
        %v417 = vpop.f32.mrb[0].mxu0
        %v418 = vadd.f32 0.0, %v417
        %v419 = vpop.f32.mrb[0].mxu0
        %420 = vmatprep.mubr.f32.mxu0 0.0
        %421 = vmatmul.mubr.f32.gmra.mrb[0].mxu0 %v225
        %v422 = vpop.f32.mrb[0].mxu0
        %v423 = vadd.f32 0.0, %v422
        %v424 = vpop.f32.mrb[0].mxu0
        %425 = vmatprep.mubr.f32.mxu0 0.0
        %426 = vmatmul.mubr.f32.gmra.mrb[0].mxu0 %v228
        %v427 = vpop.f32.mrb[0].mxu0
        %v428 = vadd.f32 0.0, %v427
        %v429 = vpop.f32.mrb[0].mxu0
        %430 = vmatprep.mubr.f32.mxu0 0.0
        %431 = vmatmul.mubr.f32.gmra.mrb[0].mxu0 %v231
        %v432 = vpop.f32.mrb[0].mxu0
        %v433 = vadd.f32 0.0, %v432
        %v434 = vpop.f32.mrb[0].mxu0
        %435 = vmatprep.mubr.f32.mxu0 0.0
        %436 = vmatmul.mubr.f32.gmra.mrb[0].mxu0 %v234
        %v437 = vpop.f32.mrb[0].mxu0
        %v438 = vadd.f32 0.0, %v437
        %v439 = vpop.f32.mrb[0].mxu0
        %440 = vmatprep.mubr.f32.mxu0 0.0
        %441 = vmatmul.mubr.f32.gmra.mrb[0].mxu0 %v237
        %v442 = vpop.f32.mrb[0].mxu0
        %v443 = vadd.f32 0.0, %v442
        %v444 = vpop.f32.mrb[0].mxu0
        %445 = vmatprep.mubr.f32.mxu0 0.0
        %446 = vmatmul.mubr.f32.gmra.mrb[0].mxu0 %v240
        %v447 = vpop.f32.mrb[0].mxu0
        %v448 = vadd.f32 0.0, %v447
        %v449 = vpop.f32.mrb[0].mxu0
        %450 = vmatprep.mubr.f32.mxu0 0.0
        %451 = vmatmul.mubr.f32.gmra.mrb[0].mxu0 %v243
        %v452 = vpop.f32.mrb[0].mxu0
        %v453 = vadd.f32 0.0, %v452
        %v454 = vpop.f32.mrb[0].mxu0
        %455 = vmatprep.mubr.f32.mxu0 0.0
        %456 = vmatmul.mubr.f32.gmra.mrb[0].mxu0 %v246
        %v457 = vpop.f32.mrb[0].mxu0
        %v458 = vadd.f32 0.0, %v457
        %v459 = vpop.f32.mrb[0].mxu0
        %460 = vmatprep.mubr.f32.mxu0 0.0
        %461 = vmatmul.mubr.f32.gmra.mrb[0].mxu0 %v249
        %v462 = vpop.f32.mrb[0].mxu0
        %v463 = vadd.f32 0.0, %v462
        %v464 = vpop.f32.mrb[0].mxu0
        %465 = vmatprep.mubr.f32.mxu0 0.0
        %466 = vmatmul.mubr.f32.gmra.mrb[0].mxu0 %v252
        %v467 = vpop.f32.mrb[0].mxu0
        %v468 = vadd.f32 0.0, %v467
        %v469 = vpop.f32.mrb[0].mxu0
        %470 = vmatprep.mubr.f32.mxu0 0.0
        %471 = vmatmul.mubr.f32.gmra.mrb[0].mxu0 %v255
        %v472 = vpop.f32.mrb[0].mxu0
        %v473 = vadd.f32 0.0, %v472
        %v474 = vpop.f32.mrb[0].mxu0
        %475 = vmatprep.mubr.f32.mxu0 0.0
        %476 = vmatmul.mubr.f32.gmra.mrb[0].mxu0 %v258
        %v477 = vpop.f32.mrb[0].mxu0
        %v478 = vadd.f32 0.0, %v477
        %v479 = vpop.f32.mrb[0].mxu0
        %480 = vmatprep.mubr.f32.mxu0 0.0
        %481 = vmatmul.mubr.f32.gmra.mrb[0].mxu0 %v261
        %v482 = vpop.f32.mrb[0].mxu0
        %v483 = vadd.f32 0.0, %v482
        %v484 = vpop.f32.mrb[0].mxu0
        %485 = vmatprep.mubr.f32.mxu0 0.0
        %486 = vmatmul.mubr.f32.gmra.mrb[0].mxu0 %v264
        %v487 = vpop.f32.mrb[0].mxu0
        %v488 = vadd.f32 0.0, %v487
        %v489 = vpop.f32.mrb[0].mxu0
        %490 = vmatprep.mubr.f32.mxu0 0.0
        %491 = vmatmul.mubr.f32.gmra.mrb[0].mxu0 %v267
        %v492 = vpop.f32.mrb[0].mxu0
        %v493 = vadd.f32 0.0, %v492
        %v494 = vpop.f32.mrb[0].mxu0
        %495 = vmatprep.mubr.f32.mxu0 0.0
        %496 = vmatmul.mubr.f32.gmra.mrb[0].mxu0 %v270
        %v497 = vpop.f32.mrb[0].mxu0
        %v498 = vadd.f32 0.0, %v497
        %v499 = vpop.f32.mrb[0].mxu0
        %500 = vdwg.mxu0
        %501 = vst [vmem:[#allocation2] sm:$0xff] %v343
        %502 = vst [vmem:[#allocation2 + $0x8] sm:$0xff] %v348
        %503 = vst [vmem:[#allocation2 + $0x10] sm:$0xff] %v353
        %504 = vst [vmem:[#allocation2 + $0x18] sm:$0xff] %v358
        %505 = vst [vmem:[#allocation2 + $0x20] sm:$0xff] %v363
        %506 = vst [vmem:[#allocation2 + $0x28] sm:$0xff] %v368
        %507 = vst [vmem:[#allocation2 + $0x30] sm:$0xff] %v373
        %508 = vst [vmem:[#allocation2 + $0x38] sm:$0xff] %v378
        %509 = vst [vmem:[#allocation2 + $0x40] sm:$0xff] %v383
        %510 = vst [vmem:[#allocation2 + $0x48] sm:$0xff] %v388
        %511 = vst [vmem:[#allocation2 + $0x50] sm:$0xff] %v393
        %512 = vst [vmem:[#allocation2 + $0x58] sm:$0xff] %v398
        %513 = vst [vmem:[#allocation2 + $0x60] sm:$0xff] %v403
        %514 = vst [vmem:[#allocation2 + $0x68] sm:$0xff] %v408
        %515 = vst [vmem:[#allocation2 + $0x70] sm:$0xff] %v413
        %516 = vst [vmem:[#allocation2 + $0x78] sm:$0xff] %v418
        %517 = vst [vmem:[#allocation2 + $0x80] sm:$0xff] %v423
        %518 = vst [vmem:[#allocation2 + $0x88] sm:$0xff] %v428
        %519 = vst [vmem:[#allocation2 + $0x90] sm:$0xff] %v433
        %520 = vst [vmem:[#allocation2 + $0x98] sm:$0xff] %v438
        %521 = vst [vmem:[#allocation2 + $0xa0] sm:$0xff] %v443
        %522 = vst [vmem:[#allocation2 + $0xa8] sm:$0xff] %v448
        %523 = vst [vmem:[#allocation2 + $0xb0] sm:$0xff] %v453
        %524 = vst [vmem:[#allocation2 + $0xb8] sm:$0xff] %v458
        %525 = vst [vmem:[#allocation2 + $0xc0] sm:$0xff] %v463
        %526 = vst [vmem:[#allocation2 + $0xc8] sm:$0xff] %v468
        %527 = vst [vmem:[#allocation2 + $0xd0] sm:$0xff] %v473
        %528 = vst [vmem:[#allocation2 + $0xd8] sm:$0xff] %v478
        %529 = vst [vmem:[#allocation2 + $0xe0] sm:$0xff] %v483
        %530 = vst [vmem:[#allocation2 + $0xe8] sm:$0xff] %v488
        %531 = vst [vmem:[#allocation2 + $0xf0] sm:$0xff] %v493
        %532 = vst [vmem:[#allocation2 + $0xf8] sm:$0xff] %v498
        %v533 = vld [vmem:[%s141 + $0x1] sm:$0xff]
        %v534 = vld [vmem:[%s141 + $0x9] sm:$0xff]
        %v535 = vld [vmem:[%s141 + $0x19] sm:$0xff]
        %v536 = vld [vmem:[%s141 + $0x21] sm:$0xff]
        %v537 = vld [vmem:[%s141 + $0x31] sm:$0xff]
        %v538 = vld [vmem:[%s141 + $0x39] sm:$0xff]
        %v539 = vld [vmem:[%s141 + $0x49] sm:$0xff]
        %v540 = vld [vmem:[%s141 + $0x51] sm:$0xff]
        %v541 = vld [vmem:[%s141 + $0x61] sm:$0xff]
        %v542 = vld [vmem:[%s141 + $0x69] sm:$0xff]
        %v543 = vld [vmem:[%s141 + $0x79] sm:$0xff]
        %v544 = vld [vmem:[%s141 + $0x81] sm:$0xff]
        %v545 = vld [vmem:[%s141 + $0x91] sm:$0xff]
        %v546 = vld [vmem:[%s141 + $0x99] sm:$0xff]
        %v547 = vld [vmem:[%s141 + $0xa9] sm:$0xff]
        %v548 = vld [vmem:[%s141 + $0xb1] sm:$0xff]
        %v549 = vld [vmem:[%s141 + $0xc1] sm:$0xff]
        %v550 = vld [vmem:[%s141 + $0xc9] sm:$0xff]
        %v551 = vld [vmem:[%s141 + $0xd9] sm:$0xff]
        %v552 = vld [vmem:[%s141 + $0xe1] sm:$0xff]
        %v553 = vld [vmem:[%s141 + $0xf1] sm:$0xff]
        %v554 = vld [vmem:[%s141 + $0xf9] sm:$0xff]
        %v555 = vld [vmem:[%s141 + $0x109] sm:$0xff]
        %v556 = vld [vmem:[%s141 + $0x111] sm:$0xff]
        %v557 = vld [vmem:[%s141 + $0x121] sm:$0xff]
        %v558 = vld [vmem:[%s141 + $0x129] sm:$0xff]
        %v559 = vld [vmem:[%s141 + $0x139] sm:$0xff]
        %v560 = vld [vmem:[%s141 + $0x141] sm:$0xff]
        %v561 = vld [vmem:[%s141 + $0x151] sm:$0xff]
        %v562 = vld [vmem:[%s141 + $0x159] sm:$0xff]
        %v563 = vld [vmem:[%s141 + $0x169] sm:$0xff]
        %v564 = vld [vmem:[%s141 + $0x171] sm:$0xff]
        %s565 = scalar_lea.vmem %s1, 4
        %v566 = vld [vmem:[%s565] sm:$0xf]
        %v568 = vsel %vm175, %v533, 0
        %v571 = vsel %vm175, %v534, 0
        %v574 = vsel %vm175, %v535, 0
        %v577 = vsel %vm175, %v536, 0
        %v580 = vsel %vm175, %v537, 0
        %v583 = vsel %vm175, %v538, 0
        %v586 = vsel %vm175, %v539, 0
        %v589 = vsel %vm175, %v540, 0
        %v592 = vsel %vm175, %v541, 0
        %v595 = vsel %vm175, %v542, 0
        %v598 = vsel %vm175, %v543, 0
        %v601 = vsel %vm175, %v544, 0
        %v604 = vsel %vm175, %v545, 0
        %v607 = vsel %vm175, %v546, 0
        %v610 = vsel %vm175, %v547, 0
        %v613 = vsel %vm175, %v548, 0
        %v616 = vsel %vm175, %v549, 0
        %v619 = vsel %vm175, %v550, 0
        %v622 = vsel %vm175, %v551, 0
        %v625 = vsel %vm175, %v552, 0
        %v628 = vsel %vm175, %v553, 0
        %v631 = vsel %vm175, %v554, 0
        %v634 = vsel %vm175, %v555, 0
        %v637 = vsel %vm175, %v556, 0
        %v640 = vsel %vm175, %v557, 0
        %v643 = vsel %vm175, %v558, 0
        %v646 = vsel %vm175, %v559, 0
        %v649 = vsel %vm175, %v560, 0
        %v652 = vsel %vm175, %v561, 0
        %v655 = vsel %vm175, %v562, 0
        %v658 = vsel %vm175, %v563, 0
        %v661 = vsel %vm175, %v564, 0
        %v664 = vsel %vm272, %v566, 0
        %666 = vmatprep.subr.mxu0 0.0
        %667 = vmatpush1.msra.mxu0 %v664
        %668 = vmatprep.subr.mxu0 0.0
        %669 = vmatpush1.msra.mxu0 0.0
        %670 = vmatprep.subr.mxu0 0.0
        %671 = vmatpush1.msra.mxu0 0.0
        %672 = vmatprep.subr.mxu0 0.0
        %673 = vmatpush1.msra.mxu0 0.0
        %674 = vmatprep.subr.mxu0 0.0
        %675 = vmatpush1.msra.mxu0 0.0
        %676 = vmatprep.subr.mxu0 0.0
        %677 = vmatpush1.msra.mxu0 0.0
        %678 = vmatprep.subr.mxu0 0.0
        %679 = vmatpush1.msra.mxu0 0.0
        %680 = vmatprep.subr.mxu0 0.0
        %681 = vmatpush1.msra.mxu0 0.0
        %682 = vmatprep.subr.mxu0 0.0
        %683 = vmatpush1.msra.mxu0 0.0
        %684 = vmatprep.subr.mxu0 0.0
        %685 = vmatpush1.msra.mxu0 0.0
        %686 = vmatprep.subr.mxu0 0.0
        %687 = vmatpush1.msra.mxu0 0.0
        %688 = vmatprep.subr.mxu0 0.0
        %689 = vmatpush1.msra.mxu0 0.0
        %690 = vmatprep.subr.mxu0 0.0
        %691 = vmatpush1.msra.mxu0 0.0
        %692 = vmatprep.subr.mxu0 0.0
        %693 = vmatpush1.msra.mxu0 0.0
        %694 = vmatprep.subr.mxu0 0.0
        %695 = vmatpush1.msra.mxu0 0.0
        %696 = vmatprep.subr.mxu0 0.0
        %697 = vmatpush1.msra.mxu0 0.0
        %698 = vmatprep.subr.mxu0 0.0
        %699 = vmatpush1.msra.mxu0 0.0
        %700 = vmatprep.subr.mxu0 0.0
        %701 = vmatpush1.msra.mxu0 0.0
        %702 = vmatprep.subr.mxu0 0.0
        %703 = vmatpush1.msra.mxu0 0.0
        %704 = vmatprep.subr.mxu0 0.0
        %705 = vmatpush1.msra.mxu0 0.0
        %706 = vmatprep.subr.mxu0 0.0
        %707 = vmatpush1.msra.mxu0 0.0
        %708 = vmatprep.subr.mxu0 0.0
        %709 = vmatpush1.msra.mxu0 0.0
        %710 = vmatprep.subr.mxu0 0.0
        %711 = vmatpush1.msra.mxu0 0.0
        %712 = vmatprep.subr.mxu0 0.0
        %713 = vmatpush1.msra.mxu0 0.0
        %714 = vmatprep.subr.mxu0 0.0
        %715 = vmatpush1.msra.mxu0 0.0
        %716 = vmatprep.subr.mxu0 0.0
        %717 = vmatpush1.msra.mxu0 0.0
        %718 = vmatprep.subr.mxu0 0.0
        %719 = vmatpush1.msra.mxu0 0.0
        %720 = vmatprep.subr.mxu0 0.0
        %721 = vmatpush1.msra.mxu0 0.0
        %722 = vmatprep.subr.mxu0 0.0
        %723 = vmatpush1.msra.mxu0 0.0
        %724 = vmatprep.subr.mxu0 0.0
        %725 = vmatpush1.msra.mxu0 0.0
        %726 = vmatprep.subr.mxu0 0.0
        %727 = vmatpush1.msra.mxu0 0.0
        %728 = vmatprep.subr.mxu0 0.0
        %729 = vmatpush1.msra.mxu0 0.0
        %730 = vmatprep.mubr.f32.mxu0 0.0
        %731 = vmatmul.mubr.f32.gmra.mrb[0].mxu0 %v568
        %v732 = vpop.f32.mrb[0].mxu0
        %v733 = vadd.f32 0.0, %v732
        %v734 = vpop.f32.mrb[0].mxu0
        %735 = vmatprep.mubr.f32.mxu0 0.0
        %736 = vmatmul.mubr.f32.gmra.mrb[0].mxu0 %v571
        %v737 = vpop.f32.mrb[0].mxu0
        %v738 = vadd.f32 0.0, %v737
        %v739 = vpop.f32.mrb[0].mxu0
        %740 = vmatprep.mubr.f32.mxu0 0.0
        %741 = vmatmul.mubr.f32.gmra.mrb[0].mxu0 %v574
        %v742 = vpop.f32.mrb[0].mxu0
        %v743 = vadd.f32 0.0, %v742
        %v744 = vpop.f32.mrb[0].mxu0
        %745 = vmatprep.mubr.f32.mxu0 0.0
        %746 = vmatmul.mubr.f32.gmra.mrb[0].mxu0 %v577
        %v747 = vpop.f32.mrb[0].mxu0
        %v748 = vadd.f32 0.0, %v747
        %v749 = vpop.f32.mrb[0].mxu0
        %750 = vmatprep.mubr.f32.mxu0 0.0
        %751 = vmatmul.mubr.f32.gmra.mrb[0].mxu0 %v580
        %v752 = vpop.f32.mrb[0].mxu0
        %v753 = vadd.f32 0.0, %v752
        %v754 = vpop.f32.mrb[0].mxu0
        %755 = vmatprep.mubr.f32.mxu0 0.0
        %756 = vmatmul.mubr.f32.gmra.mrb[0].mxu0 %v583
        %v757 = vpop.f32.mrb[0].mxu0
        %v758 = vadd.f32 0.0, %v757
        %v759 = vpop.f32.mrb[0].mxu0
        %760 = vmatprep.mubr.f32.mxu0 0.0
        %761 = vmatmul.mubr.f32.gmra.mrb[0].mxu0 %v586
        %v762 = vpop.f32.mrb[0].mxu0
        %v763 = vadd.f32 0.0, %v762
        %v764 = vpop.f32.mrb[0].mxu0
        %765 = vmatprep.mubr.f32.mxu0 0.0
        %766 = vmatmul.mubr.f32.gmra.mrb[0].mxu0 %v589
        %v767 = vpop.f32.mrb[0].mxu0
        %v768 = vadd.f32 0.0, %v767
        %v769 = vpop.f32.mrb[0].mxu0
        %770 = vmatprep.mubr.f32.mxu0 0.0
        %771 = vmatmul.mubr.f32.gmra.mrb[0].mxu0 %v592
        %v772 = vpop.f32.mrb[0].mxu0
        %v773 = vadd.f32 0.0, %v772
        %v774 = vpop.f32.mrb[0].mxu0
        %775 = vmatprep.mubr.f32.mxu0 0.0
        %776 = vmatmul.mubr.f32.gmra.mrb[0].mxu0 %v595
        %v777 = vpop.f32.mrb[0].mxu0
        %v778 = vadd.f32 0.0, %v777
        %v779 = vpop.f32.mrb[0].mxu0
        %780 = vmatprep.mubr.f32.mxu0 0.0
        %781 = vmatmul.mubr.f32.gmra.mrb[0].mxu0 %v598
        %v782 = vpop.f32.mrb[0].mxu0
        %v783 = vadd.f32 0.0, %v782
        %v784 = vpop.f32.mrb[0].mxu0
        %785 = vmatprep.mubr.f32.mxu0 0.0
        %786 = vmatmul.mubr.f32.gmra.mrb[0].mxu0 %v601
        %v787 = vpop.f32.mrb[0].mxu0
        %v788 = vadd.f32 0.0, %v787
        %v789 = vpop.f32.mrb[0].mxu0
        %790 = vmatprep.mubr.f32.mxu0 0.0
        %791 = vmatmul.mubr.f32.gmra.mrb[0].mxu0 %v604
        %v792 = vpop.f32.mrb[0].mxu0
        %v793 = vadd.f32 0.0, %v792
        %v794 = vpop.f32.mrb[0].mxu0
        %795 = vmatprep.mubr.f32.mxu0 0.0
        %796 = vmatmul.mubr.f32.gmra.mrb[0].mxu0 %v607
        %v797 = vpop.f32.mrb[0].mxu0
        %v798 = vadd.f32 0.0, %v797
        %v799 = vpop.f32.mrb[0].mxu0
        %800 = vmatprep.mubr.f32.mxu0 0.0
        %801 = vmatmul.mubr.f32.gmra.mrb[0].mxu0 %v610
        %v802 = vpop.f32.mrb[0].mxu0
        %v803 = vadd.f32 0.0, %v802
        %v804 = vpop.f32.mrb[0].mxu0
        %805 = vmatprep.mubr.f32.mxu0 0.0
        %806 = vmatmul.mubr.f32.gmra.mrb[0].mxu0 %v613
        %v807 = vpop.f32.mrb[0].mxu0
        %v808 = vadd.f32 0.0, %v807
        %v809 = vpop.f32.mrb[0].mxu0
        %810 = vmatprep.mubr.f32.mxu0 0.0
        %811 = vmatmul.mubr.f32.gmra.mrb[0].mxu0 %v616
        %v812 = vpop.f32.mrb[0].mxu0
        %v813 = vadd.f32 0.0, %v812
        %v814 = vpop.f32.mrb[0].mxu0
        %815 = vmatprep.mubr.f32.mxu0 0.0
        %816 = vmatmul.mubr.f32.gmra.mrb[0].mxu0 %v619
        %v817 = vpop.f32.mrb[0].mxu0
        %v818 = vadd.f32 0.0, %v817
        %v819 = vpop.f32.mrb[0].mxu0
        %820 = vmatprep.mubr.f32.mxu0 0.0
        %821 = vmatmul.mubr.f32.gmra.mrb[0].mxu0 %v622
        %v822 = vpop.f32.mrb[0].mxu0
        %v823 = vadd.f32 0.0, %v822
        %v824 = vpop.f32.mrb[0].mxu0
        %825 = vmatprep.mubr.f32.mxu0 0.0
        %826 = vmatmul.mubr.f32.gmra.mrb[0].mxu0 %v625
        %v827 = vpop.f32.mrb[0].mxu0
        %v828 = vadd.f32 0.0, %v827
        %v829 = vpop.f32.mrb[0].mxu0
        %830 = vmatprep.mubr.f32.mxu0 0.0
        %831 = vmatmul.mubr.f32.gmra.mrb[0].mxu0 %v628
        %v832 = vpop.f32.mrb[0].mxu0
        %v833 = vadd.f32 0.0, %v832
        %v834 = vpop.f32.mrb[0].mxu0
        %835 = vmatprep.mubr.f32.mxu0 0.0
        %836 = vmatmul.mubr.f32.gmra.mrb[0].mxu0 %v631
        %v837 = vpop.f32.mrb[0].mxu0
        %v838 = vadd.f32 0.0, %v837
        %v839 = vpop.f32.mrb[0].mxu0
        %840 = vmatprep.mubr.f32.mxu0 0.0
        %841 = vmatmul.mubr.f32.gmra.mrb[0].mxu0 %v634
        %v842 = vpop.f32.mrb[0].mxu0
        %v843 = vadd.f32 0.0, %v842
        %v844 = vpop.f32.mrb[0].mxu0
        %845 = vmatprep.mubr.f32.mxu0 0.0
        %846 = vmatmul.mubr.f32.gmra.mrb[0].mxu0 %v637
        %v847 = vpop.f32.mrb[0].mxu0
        %v848 = vadd.f32 0.0, %v847
        %v849 = vpop.f32.mrb[0].mxu0
        %850 = vmatprep.mubr.f32.mxu0 0.0
        %851 = vmatmul.mubr.f32.gmra.mrb[0].mxu0 %v640
        %v852 = vpop.f32.mrb[0].mxu0
        %v853 = vadd.f32 0.0, %v852
        %v854 = vpop.f32.mrb[0].mxu0
        %855 = vmatprep.mubr.f32.mxu0 0.0
        %856 = vmatmul.mubr.f32.gmra.mrb[0].mxu0 %v643
        %v857 = vpop.f32.mrb[0].mxu0
        %v858 = vadd.f32 0.0, %v857
        %v859 = vpop.f32.mrb[0].mxu0
        %860 = vmatprep.mubr.f32.mxu0 0.0
        %861 = vmatmul.mubr.f32.gmra.mrb[0].mxu0 %v646
        %v862 = vpop.f32.mrb[0].mxu0
        %v863 = vadd.f32 0.0, %v862
        %v864 = vpop.f32.mrb[0].mxu0
        %865 = vmatprep.mubr.f32.mxu0 0.0
        %866 = vmatmul.mubr.f32.gmra.mrb[0].mxu0 %v649
        %v867 = vpop.f32.mrb[0].mxu0
        %v868 = vadd.f32 0.0, %v867
        %v869 = vpop.f32.mrb[0].mxu0
        %870 = vmatprep.mubr.f32.mxu0 0.0
        %871 = vmatmul.mubr.f32.gmra.mrb[0].mxu0 %v652
        %v872 = vpop.f32.mrb[0].mxu0
        %v873 = vadd.f32 0.0, %v872
        %v874 = vpop.f32.mrb[0].mxu0
        %875 = vmatprep.mubr.f32.mxu0 0.0
        %876 = vmatmul.mubr.f32.gmra.mrb[0].mxu0 %v655
        %v877 = vpop.f32.mrb[0].mxu0
        %v878 = vadd.f32 0.0, %v877
        %v879 = vpop.f32.mrb[0].mxu0
        %880 = vmatprep.mubr.f32.mxu0 0.0
        %881 = vmatmul.mubr.f32.gmra.mrb[0].mxu0 %v658
        %v882 = vpop.f32.mrb[0].mxu0
        %v883 = vadd.f32 0.0, %v882
        %v884 = vpop.f32.mrb[0].mxu0
        %885 = vmatprep.mubr.f32.mxu0 0.0
        %886 = vmatmul.mubr.f32.gmra.mrb[0].mxu0 %v661
        %v887 = vpop.f32.mrb[0].mxu0
        %v888 = vadd.f32 0.0, %v887
        %v889 = vpop.f32.mrb[0].mxu0
        %890 = vdwg.mxu0
        %v891 = vld [vmem:[#allocation2] sm:$0xff]
        %v892 = vld [vmem:[#allocation2 + $0x8] sm:$0xff]
        %v893 = vld [vmem:[#allocation2 + $0x10] sm:$0xff]
        %v894 = vld [vmem:[#allocation2 + $0x18] sm:$0xff]
        %v895 = vld [vmem:[#allocation2 + $0x20] sm:$0xff]
        %v896 = vld [vmem:[#allocation2 + $0x28] sm:$0xff]
        %v897 = vld [vmem:[#allocation2 + $0x30] sm:$0xff]
        %v898 = vld [vmem:[#allocation2 + $0x38] sm:$0xff]
        %v899 = vld [vmem:[#allocation2 + $0x40] sm:$0xff]
        %v900 = vld [vmem:[#allocation2 + $0x48] sm:$0xff]
        %v901 = vld [vmem:[#allocation2 + $0x50] sm:$0xff]
        %v902 = vld [vmem:[#allocation2 + $0x58] sm:$0xff]
        %v903 = vld [vmem:[#allocation2 + $0x60] sm:$0xff]
        %v904 = vld [vmem:[#allocation2 + $0x68] sm:$0xff]
        %v905 = vld [vmem:[#allocation2 + $0x70] sm:$0xff]
        %v906 = vld [vmem:[#allocation2 + $0x78] sm:$0xff]
        %v907 = vld [vmem:[#allocation2 + $0x80] sm:$0xff]
        %v908 = vld [vmem:[#allocation2 + $0x88] sm:$0xff]
        %v909 = vld [vmem:[#allocation2 + $0x90] sm:$0xff]
        %v910 = vld [vmem:[#allocation2 + $0x98] sm:$0xff]
        %v911 = vld [vmem:[#allocation2 + $0xa0] sm:$0xff]
        %v912 = vld [vmem:[#allocation2 + $0xa8] sm:$0xff]
        %v913 = vld [vmem:[#allocation2 + $0xb0] sm:$0xff]
        %v914 = vld [vmem:[#allocation2 + $0xb8] sm:$0xff]
        %v915 = vld [vmem:[#allocation2 + $0xc0] sm:$0xff]
        %v916 = vld [vmem:[#allocation2 + $0xc8] sm:$0xff]
        %v917 = vld [vmem:[#allocation2 + $0xd0] sm:$0xff]
        %v918 = vld [vmem:[#allocation2 + $0xd8] sm:$0xff]
        %v919 = vld [vmem:[#allocation2 + $0xe0] sm:$0xff]
        %v920 = vld [vmem:[#allocation2 + $0xe8] sm:$0xff]
        %v921 = vld [vmem:[#allocation2 + $0xf0] sm:$0xff]
        %v922 = vld [vmem:[#allocation2 + $0xf8] sm:$0xff]
        %v923 = vadd.f32 %v891, %v733
        %v924 = vadd.f32 %v892, %v738
        %v925 = vadd.f32 %v893, %v743
        %v926 = vadd.f32 %v894, %v748
        %v927 = vadd.f32 %v895, %v753
        %v928 = vadd.f32 %v896, %v758
        %v929 = vadd.f32 %v897, %v763
        %v930 = vadd.f32 %v898, %v768
        %v931 = vadd.f32 %v899, %v773
        %v932 = vadd.f32 %v900, %v778
        %v933 = vadd.f32 %v901, %v783
        %v934 = vadd.f32 %v902, %v788
        %v935 = vadd.f32 %v903, %v793
        %v936 = vadd.f32 %v904, %v798
        %v937 = vadd.f32 %v905, %v803
        %v938 = vadd.f32 %v906, %v808
        %v939 = vadd.f32 %v907, %v813
        %v940 = vadd.f32 %v908, %v818
        %v941 = vadd.f32 %v909, %v823
        %v942 = vadd.f32 %v910, %v828
        %v943 = vadd.f32 %v911, %v833
        %v944 = vadd.f32 %v912, %v838
        %v945 = vadd.f32 %v913, %v843
        %v946 = vadd.f32 %v914, %v848
        %v947 = vadd.f32 %v915, %v853
        %v948 = vadd.f32 %v916, %v858
        %v949 = vadd.f32 %v917, %v863
        %v950 = vadd.f32 %v918, %v868
        %v951 = vadd.f32 %v919, %v873
        %v952 = vadd.f32 %v920, %v878
        %v953 = vadd.f32 %v921, %v883
        %v954 = vadd.f32 %v922, %v888
        %955 = vst [vmem:[#allocation2] sm:$0xff] %v923
        %956 = vst [vmem:[#allocation2 + $0x8] sm:$0xff] %v924
        %957 = vst [vmem:[#allocation2 + $0x10] sm:$0xff] %v925
        %958 = vst [vmem:[#allocation2 + $0x18] sm:$0xff] %v926
        %959 = vst [vmem:[#allocation2 + $0x20] sm:$0xff] %v927
        %960 = vst [vmem:[#allocation2 + $0x28] sm:$0xff] %v928
        %961 = vst [vmem:[#allocation2 + $0x30] sm:$0xff] %v929
        %962 = vst [vmem:[#allocation2 + $0x38] sm:$0xff] %v930
        %963 = vst [vmem:[#allocation2 + $0x40] sm:$0xff] %v931
        %964 = vst [vmem:[#allocation2 + $0x48] sm:$0xff] %v932
        %965 = vst [vmem:[#allocation2 + $0x50] sm:$0xff] %v933
        %966 = vst [vmem:[#allocation2 + $0x58] sm:$0xff] %v934
        %967 = vst [vmem:[#allocation2 + $0x60] sm:$0xff] %v935
        %968 = vst [vmem:[#allocation2 + $0x68] sm:$0xff] %v936
        %969 = vst [vmem:[#allocation2 + $0x70] sm:$0xff] %v937
        %970 = vst [vmem:[#allocation2 + $0x78] sm:$0xff] %v938
        %971 = vst [vmem:[#allocation2 + $0x80] sm:$0xff] %v939
        %972 = vst [vmem:[#allocation2 + $0x88] sm:$0xff] %v940
        %973 = vst [vmem:[#allocation2 + $0x90] sm:$0xff] %v941
        %974 = vst [vmem:[#allocation2 + $0x98] sm:$0xff] %v942
        %975 = vst [vmem:[#allocation2 + $0xa0] sm:$0xff] %v943
        %976 = vst [vmem:[#allocation2 + $0xa8] sm:$0xff] %v944
        %977 = vst [vmem:[#allocation2 + $0xb0] sm:$0xff] %v945
        %978 = vst [vmem:[#allocation2 + $0xb8] sm:$0xff] %v946
        %979 = vst [vmem:[#allocation2 + $0xc0] sm:$0xff] %v947
        %980 = vst [vmem:[#allocation2 + $0xc8] sm:$0xff] %v948
        %981 = vst [vmem:[#allocation2 + $0xd0] sm:$0xff] %v949
        %982 = vst [vmem:[#allocation2 + $0xd8] sm:$0xff] %v950
        %983 = vst [vmem:[#allocation2 + $0xe0] sm:$0xff] %v951
        %984 = vst [vmem:[#allocation2 + $0xe8] sm:$0xff] %v952
        %985 = vst [vmem:[#allocation2 + $0xf0] sm:$0xff] %v953
        %986 = vst [vmem:[#allocation2 + $0xf8] sm:$0xff] %v954
        %s987 = scalar_lea.vmem %s141, 24
        %v988 = vld [vmem:[%s987] sm:$0xff]
        %v989 = vld [vmem:[%s987 + $0x8] sm:$0xff]
        %v990 = vld [vmem:[%s987 + $0x18] sm:$0xff]
        %v991 = vld [vmem:[%s987 + $0x20] sm:$0xff]
        %v992 = vld [vmem:[%s987 + $0x30] sm:$0xff]
        %v993 = vld [vmem:[%s987 + $0x38] sm:$0xff]
        %v994 = vld [vmem:[%s987 + $0x48] sm:$0xff]
        %v995 = vld [vmem:[%s987 + $0x50] sm:$0xff]
        %v996 = vld [vmem:[%s987 + $0x60] sm:$0xff]
        %v997 = vld [vmem:[%s987 + $0x68] sm:$0xff]
        %v998 = vld [vmem:[%s987 + $0x78] sm:$0xff]
        %v999 = vld [vmem:[%s987 + $0x80] sm:$0xff]
        %v1000 = vld [vmem:[%s987 + $0x90] sm:$0xff]
        %v1001 = vld [vmem:[%s987 + $0x98] sm:$0xff]
        %v1002 = vld [vmem:[%s987 + $0xa8] sm:$0xff]
        %v1003 = vld [vmem:[%s987 + $0xb0] sm:$0xff]
        %v1004 = vld [vmem:[%s987 + $0xc0] sm:$0xff]
        %v1005 = vld [vmem:[%s987 + $0xc8] sm:$0xff]
        %v1006 = vld [vmem:[%s987 + $0xd8] sm:$0xff]
        %v1007 = vld [vmem:[%s987 + $0xe0] sm:$0xff]
        %v1008 = vld [vmem:[%s987 + $0xf0] sm:$0xff]
        %v1009 = vld [vmem:[%s987 + $0xf8] sm:$0xff]
        %v1010 = vld [vmem:[%s987 + $0x108] sm:$0xff]
        %v1011 = vld [vmem:[%s987 + $0x110] sm:$0xff]
        %v1012 = vld [vmem:[%s987 + $0x120] sm:$0xff]
        %v1013 = vld [vmem:[%s987 + $0x128] sm:$0xff]
        %v1014 = vld [vmem:[%s987 + $0x138] sm:$0xff]
        %v1015 = vld [vmem:[%s987 + $0x140] sm:$0xff]
        %v1016 = vld [vmem:[%s987 + $0x150] sm:$0xff]
        %v1017 = vld [vmem:[%s987 + $0x158] sm:$0xff]
        %v1018 = vld [vmem:[%s987 + $0x168] sm:$0xff]
        %v1019 = vld [vmem:[%s987 + $0x170] sm:$0xff]
        %s1020 = scalar_lea.vmem %s1, 8
        %v1021 = vld [vmem:[%s1020] sm:$0xf]
        %v1023 = vsel %vm175, %v988, 0
        %v1026 = vsel %vm175, %v989, 0
        %v1029 = vsel %vm175, %v990, 0
        %v1032 = vsel %vm175, %v991, 0
        %v1035 = vsel %vm175, %v992, 0
        %v1038 = vsel %vm175, %v993, 0
        %v1041 = vsel %vm175, %v994, 0
        %v1044 = vsel %vm175, %v995, 0
        %v1047 = vsel %vm175, %v996, 0
        %v1050 = vsel %vm175, %v997, 0
        %v1053 = vsel %vm175, %v998, 0
        %v1056 = vsel %vm175, %v999, 0
        %v1059 = vsel %vm175, %v1000, 0
        %v1062 = vsel %vm175, %v1001, 0
        %v1065 = vsel %vm175, %v1002, 0
        %v1068 = vsel %vm175, %v1003, 0
        %v1071 = vsel %vm175, %v1004, 0
        %v1074 = vsel %vm175, %v1005, 0
        %v1077 = vsel %vm175, %v1006, 0
        %v1080 = vsel %vm175, %v1007, 0
        %v1083 = vsel %vm175, %v1008, 0
        %v1086 = vsel %vm175, %v1009, 0
        %v1089 = vsel %vm175, %v1010, 0
        %v1092 = vsel %vm175, %v1011, 0
        %v1095 = vsel %vm175, %v1012, 0
        %v1098 = vsel %vm175, %v1013, 0
        %v1101 = vsel %vm175, %v1014, 0
        %v1104 = vsel %vm175, %v1015, 0
        %v1107 = vsel %vm175, %v1016, 0
        %v1110 = vsel %vm175, %v1017, 0
        %v1113 = vsel %vm175, %v1018, 0
        %v1116 = vsel %vm175, %v1019, 0
        %v1119 = vsel %vm272, %v1021, 0
        %1121 = vmatprep.subr.mxu0 0.0
        %1122 = vmatpush1.msra.mxu0 %v1119
        %1123 = vmatprep.subr.mxu0 0.0
        %1124 = vmatpush1.msra.mxu0 0.0
        %1125 = vmatprep.subr.mxu0 0.0
        %1126 = vmatpush1.msra.mxu0 0.0
        %1127 = vmatprep.subr.mxu0 0.0
        %1128 = vmatpush1.msra.mxu0 0.0
        %1129 = vmatprep.subr.mxu0 0.0
        %1130 = vmatpush1.msra.mxu0 0.0
        %1131 = vmatprep.subr.mxu0 0.0
        %1132 = vmatpush1.msra.mxu0 0.0
        %1133 = vmatprep.subr.mxu0 0.0
        %1134 = vmatpush1.msra.mxu0 0.0
        %1135 = vmatprep.subr.mxu0 0.0
        %1136 = vmatpush1.msra.mxu0 0.0
        %1137 = vmatprep.subr.mxu0 0.0
        %1138 = vmatpush1.msra.mxu0 0.0
        %1139 = vmatprep.subr.mxu0 0.0
        %1140 = vmatpush1.msra.mxu0 0.0
        %1141 = vmatprep.subr.mxu0 0.0
        %1142 = vmatpush1.msra.mxu0 0.0
        %1143 = vmatprep.subr.mxu0 0.0
        %1144 = vmatpush1.msra.mxu0 0.0
        %1145 = vmatprep.subr.mxu0 0.0
        %1146 = vmatpush1.msra.mxu0 0.0
        %1147 = vmatprep.subr.mxu0 0.0
        %1148 = vmatpush1.msra.mxu0 0.0
        %1149 = vmatprep.subr.mxu0 0.0
        %1150 = vmatpush1.msra.mxu0 0.0
        %1151 = vmatprep.subr.mxu0 0.0
        %1152 = vmatpush1.msra.mxu0 0.0
        %1153 = vmatprep.subr.mxu0 0.0
        %1154 = vmatpush1.msra.mxu0 0.0
        %1155 = vmatprep.subr.mxu0 0.0
        %1156 = vmatpush1.msra.mxu0 0.0
        %1157 = vmatprep.subr.mxu0 0.0
        %1158 = vmatpush1.msra.mxu0 0.0
        %1159 = vmatprep.subr.mxu0 0.0
        %1160 = vmatpush1.msra.mxu0 0.0
        %1161 = vmatprep.subr.mxu0 0.0
        %1162 = vmatpush1.msra.mxu0 0.0
        %1163 = vmatprep.subr.mxu0 0.0
        %1164 = vmatpush1.msra.mxu0 0.0
        %1165 = vmatprep.subr.mxu0 0.0
        %1166 = vmatpush1.msra.mxu0 0.0
        %1167 = vmatprep.subr.mxu0 0.0
        %1168 = vmatpush1.msra.mxu0 0.0
        %1169 = vmatprep.subr.mxu0 0.0
        %1170 = vmatpush1.msra.mxu0 0.0
        %1171 = vmatprep.subr.mxu0 0.0
        %1172 = vmatpush1.msra.mxu0 0.0
        %1173 = vmatprep.subr.mxu0 0.0
        %1174 = vmatpush1.msra.mxu0 0.0
        %1175 = vmatprep.subr.mxu0 0.0
        %1176 = vmatpush1.msra.mxu0 0.0
        %1177 = vmatprep.subr.mxu0 0.0
        %1178 = vmatpush1.msra.mxu0 0.0
        %1179 = vmatprep.subr.mxu0 0.0
        %1180 = vmatpush1.msra.mxu0 0.0
        %1181 = vmatprep.subr.mxu0 0.0
        %1182 = vmatpush1.msra.mxu0 0.0
        %1183 = vmatprep.subr.mxu0 0.0
        %1184 = vmatpush1.msra.mxu0 0.0
        %1185 = vmatprep.mubr.f32.mxu0 0.0
        %1186 = vmatmul.mubr.f32.gmra.mrb[0].mxu0 %v1023
        %v1187 = vpop.f32.mrb[0].mxu0
        %v1188 = vadd.f32 0.0, %v1187
        %v1189 = vpop.f32.mrb[0].mxu0
        %1190 = vmatprep.mubr.f32.mxu0 0.0
        %1191 = vmatmul.mubr.f32.gmra.mrb[0].mxu0 %v1026
        %v1192 = vpop.f32.mrb[0].mxu0
        %v1193 = vadd.f32 0.0, %v1192
        %v1194 = vpop.f32.mrb[0].mxu0
        %1195 = vmatprep.mubr.f32.mxu0 0.0
        %1196 = vmatmul.mubr.f32.gmra.mrb[0].mxu0 %v1029
        %v1197 = vpop.f32.mrb[0].mxu0
        %v1198 = vadd.f32 0.0, %v1197
        %v1199 = vpop.f32.mrb[0].mxu0
        %1200 = vmatprep.mubr.f32.mxu0 0.0
        %1201 = vmatmul.mubr.f32.gmra.mrb[0].mxu0 %v1032
        %v1202 = vpop.f32.mrb[0].mxu0
        %v1203 = vadd.f32 0.0, %v1202
        %v1204 = vpop.f32.mrb[0].mxu0
        %1205 = vmatprep.mubr.f32.mxu0 0.0
        %1206 = vmatmul.mubr.f32.gmra.mrb[0].mxu0 %v1035
        %v1207 = vpop.f32.mrb[0].mxu0
        %v1208 = vadd.f32 0.0, %v1207
        %v1209 = vpop.f32.mrb[0].mxu0
        %1210 = vmatprep.mubr.f32.mxu0 0.0
        %1211 = vmatmul.mubr.f32.gmra.mrb[0].mxu0 %v1038
        %v1212 = vpop.f32.mrb[0].mxu0
        %v1213 = vadd.f32 0.0, %v1212
        %v1214 = vpop.f32.mrb[0].mxu0
        %1215 = vmatprep.mubr.f32.mxu0 0.0
        %1216 = vmatmul.mubr.f32.gmra.mrb[0].mxu0 %v1041
        %v1217 = vpop.f32.mrb[0].mxu0
        %v1218 = vadd.f32 0.0, %v1217
        %v1219 = vpop.f32.mrb[0].mxu0
        %1220 = vmatprep.mubr.f32.mxu0 0.0
        %1221 = vmatmul.mubr.f32.gmra.mrb[0].mxu0 %v1044
        %v1222 = vpop.f32.mrb[0].mxu0
        %v1223 = vadd.f32 0.0, %v1222
        %v1224 = vpop.f32.mrb[0].mxu0
        %1225 = vmatprep.mubr.f32.mxu0 0.0
        %1226 = vmatmul.mubr.f32.gmra.mrb[0].mxu0 %v1047
        %v1227 = vpop.f32.mrb[0].mxu0
        %v1228 = vadd.f32 0.0, %v1227
        %v1229 = vpop.f32.mrb[0].mxu0
        %1230 = vmatprep.mubr.f32.mxu0 0.0
        %1231 = vmatmul.mubr.f32.gmra.mrb[0].mxu0 %v1050
        %v1232 = vpop.f32.mrb[0].mxu0
        %v1233 = vadd.f32 0.0, %v1232
        %v1234 = vpop.f32.mrb[0].mxu0
        %1235 = vmatprep.mubr.f32.mxu0 0.0
        %1236 = vmatmul.mubr.f32.gmra.mrb[0].mxu0 %v1053
        %v1237 = vpop.f32.mrb[0].mxu0
        %v1238 = vadd.f32 0.0, %v1237
        %v1239 = vpop.f32.mrb[0].mxu0
        %1240 = vmatprep.mubr.f32.mxu0 0.0
        %1241 = vmatmul.mubr.f32.gmra.mrb[0].mxu0 %v1056
        %v1242 = vpop.f32.mrb[0].mxu0
        %v1243 = vadd.f32 0.0, %v1242
        %v1244 = vpop.f32.mrb[0].mxu0
        %1245 = vmatprep.mubr.f32.mxu0 0.0
        %1246 = vmatmul.mubr.f32.gmra.mrb[0].mxu0 %v1059
        %v1247 = vpop.f32.mrb[0].mxu0
        %v1248 = vadd.f32 0.0, %v1247
        %v1249 = vpop.f32.mrb[0].mxu0
        %1250 = vmatprep.mubr.f32.mxu0 0.0
        %1251 = vmatmul.mubr.f32.gmra.mrb[0].mxu0 %v1062
        %v1252 = vpop.f32.mrb[0].mxu0
        %v1253 = vadd.f32 0.0, %v1252
        %v1254 = vpop.f32.mrb[0].mxu0
        %1255 = vmatprep.mubr.f32.mxu0 0.0
        %1256 = vmatmul.mubr.f32.gmra.mrb[0].mxu0 %v1065
        %v1257 = vpop.f32.mrb[0].mxu0
        %v1258 = vadd.f32 0.0, %v1257
        %v1259 = vpop.f32.mrb[0].mxu0
        %1260 = vmatprep.mubr.f32.mxu0 0.0
        %1261 = vmatmul.mubr.f32.gmra.mrb[0].mxu0 %v1068
        %v1262 = vpop.f32.mrb[0].mxu0
        %v1263 = vadd.f32 0.0, %v1262
        %v1264 = vpop.f32.mrb[0].mxu0
        %1265 = vmatprep.mubr.f32.mxu0 0.0
        %1266 = vmatmul.mubr.f32.gmra.mrb[0].mxu0 %v1071
        %v1267 = vpop.f32.mrb[0].mxu0
        %v1268 = vadd.f32 0.0, %v1267
        %v1269 = vpop.f32.mrb[0].mxu0
        %1270 = vmatprep.mubr.f32.mxu0 0.0
        %1271 = vmatmul.mubr.f32.gmra.mrb[0].mxu0 %v1074
        %v1272 = vpop.f32.mrb[0].mxu0
        %v1273 = vadd.f32 0.0, %v1272
        %v1274 = vpop.f32.mrb[0].mxu0
        %1275 = vmatprep.mubr.f32.mxu0 0.0
        %1276 = vmatmul.mubr.f32.gmra.mrb[0].mxu0 %v1077
        %v1277 = vpop.f32.mrb[0].mxu0
        %v1278 = vadd.f32 0.0, %v1277
        %v1279 = vpop.f32.mrb[0].mxu0
        %1280 = vmatprep.mubr.f32.mxu0 0.0
        %1281 = vmatmul.mubr.f32.gmra.mrb[0].mxu0 %v1080
        %v1282 = vpop.f32.mrb[0].mxu0
        %v1283 = vadd.f32 0.0, %v1282
        %v1284 = vpop.f32.mrb[0].mxu0
        %1285 = vmatprep.mubr.f32.mxu0 0.0
        %1286 = vmatmul.mubr.f32.gmra.mrb[0].mxu0 %v1083
        %v1287 = vpop.f32.mrb[0].mxu0
        %v1288 = vadd.f32 0.0, %v1287
        %v1289 = vpop.f32.mrb[0].mxu0
        %1290 = vmatprep.mubr.f32.mxu0 0.0
        %1291 = vmatmul.mubr.f32.gmra.mrb[0].mxu0 %v1086
        %v1292 = vpop.f32.mrb[0].mxu0
        %v1293 = vadd.f32 0.0, %v1292
        %v1294 = vpop.f32.mrb[0].mxu0
        %1295 = vmatprep.mubr.f32.mxu0 0.0
        %1296 = vmatmul.mubr.f32.gmra.mrb[0].mxu0 %v1089
        %v1297 = vpop.f32.mrb[0].mxu0
        %v1298 = vadd.f32 0.0, %v1297
        %v1299 = vpop.f32.mrb[0].mxu0
        %1300 = vmatprep.mubr.f32.mxu0 0.0
        %1301 = vmatmul.mubr.f32.gmra.mrb[0].mxu0 %v1092
        %v1302 = vpop.f32.mrb[0].mxu0
        %v1303 = vadd.f32 0.0, %v1302
        %v1304 = vpop.f32.mrb[0].mxu0
        %1305 = vmatprep.mubr.f32.mxu0 0.0
        %1306 = vmatmul.mubr.f32.gmra.mrb[0].mxu0 %v1095
        %v1307 = vpop.f32.mrb[0].mxu0
        %v1308 = vadd.f32 0.0, %v1307
        %v1309 = vpop.f32.mrb[0].mxu0
        %1310 = vmatprep.mubr.f32.mxu0 0.0
        %1311 = vmatmul.mubr.f32.gmra.mrb[0].mxu0 %v1098
        %v1312 = vpop.f32.mrb[0].mxu0
        %v1313 = vadd.f32 0.0, %v1312
        %v1314 = vpop.f32.mrb[0].mxu0
        %1315 = vmatprep.mubr.f32.mxu0 0.0
        %1316 = vmatmul.mubr.f32.gmra.mrb[0].mxu0 %v1101
        %v1317 = vpop.f32.mrb[0].mxu0
        %v1318 = vadd.f32 0.0, %v1317
        %v1319 = vpop.f32.mrb[0].mxu0
        %1320 = vmatprep.mubr.f32.mxu0 0.0
        %1321 = vmatmul.mubr.f32.gmra.mrb[0].mxu0 %v1104
        %v1322 = vpop.f32.mrb[0].mxu0
        %v1323 = vadd.f32 0.0, %v1322
        %v1324 = vpop.f32.mrb[0].mxu0
        %1325 = vmatprep.mubr.f32.mxu0 0.0
        %1326 = vmatmul.mubr.f32.gmra.mrb[0].mxu0 %v1107
        %v1327 = vpop.f32.mrb[0].mxu0
        %v1328 = vadd.f32 0.0, %v1327
        %v1329 = vpop.f32.mrb[0].mxu0
        %1330 = vmatprep.mubr.f32.mxu0 0.0
        %1331 = vmatmul.mubr.f32.gmra.mrb[0].mxu0 %v1110
        %v1332 = vpop.f32.mrb[0].mxu0
        %v1333 = vadd.f32 0.0, %v1332
        %v1334 = vpop.f32.mrb[0].mxu0
        %1335 = vmatprep.mubr.f32.mxu0 0.0
        %1336 = vmatmul.mubr.f32.gmra.mrb[0].mxu0 %v1113
        %v1337 = vpop.f32.mrb[0].mxu0
        %v1338 = vadd.f32 0.0, %v1337
        %v1339 = vpop.f32.mrb[0].mxu0
        %1340 = vmatprep.mubr.f32.mxu0 0.0
        %1341 = vmatmul.mubr.f32.gmra.mrb[0].mxu0 %v1116
        %v1342 = vpop.f32.mrb[0].mxu0
        %v1343 = vadd.f32 0.0, %v1342
        %v1344 = vpop.f32.mrb[0].mxu0
        %1345 = vdwg.mxu0
        %v1346 = vld [vmem:[#allocation2] sm:$0xff]
        %v1347 = vld [vmem:[#allocation2 + $0x8] sm:$0xff]
        %v1348 = vld [vmem:[#allocation2 + $0x10] sm:$0xff]
        %v1349 = vld [vmem:[#allocation2 + $0x18] sm:$0xff]
        %v1350 = vld [vmem:[#allocation2 + $0x20] sm:$0xff]
        %v1351 = vld [vmem:[#allocation2 + $0x28] sm:$0xff]
        %v1352 = vld [vmem:[#allocation2 + $0x30] sm:$0xff]
        %v1353 = vld [vmem:[#allocation2 + $0x38] sm:$0xff]
        %v1354 = vld [vmem:[#allocation2 + $0x40] sm:$0xff]
        %v1355 = vld [vmem:[#allocation2 + $0x48] sm:$0xff]
        %v1356 = vld [vmem:[#allocation2 + $0x50] sm:$0xff]
        %v1357 = vld [vmem:[#allocation2 + $0x58] sm:$0xff]
        %v1358 = vld [vmem:[#allocation2 + $0x60] sm:$0xff]
        %v1359 = vld [vmem:[#allocation2 + $0x68] sm:$0xff]
        %v1360 = vld [vmem:[#allocation2 + $0x70] sm:$0xff]
        %v1361 = vld [vmem:[#allocation2 + $0x78] sm:$0xff]
        %v1362 = vld [vmem:[#allocation2 + $0x80] sm:$0xff]
        %v1363 = vld [vmem:[#allocation2 + $0x88] sm:$0xff]
        %v1364 = vld [vmem:[#allocation2 + $0x90] sm:$0xff]
        %v1365 = vld [vmem:[#allocation2 + $0x98] sm:$0xff]
        %v1366 = vld [vmem:[#allocation2 + $0xa0] sm:$0xff]
        %v1367 = vld [vmem:[#allocation2 + $0xa8] sm:$0xff]
        %v1368 = vld [vmem:[#allocation2 + $0xb0] sm:$0xff]
        %v1369 = vld [vmem:[#allocation2 + $0xb8] sm:$0xff]
        %v1370 = vld [vmem:[#allocation2 + $0xc0] sm:$0xff]
        %v1371 = vld [vmem:[#allocation2 + $0xc8] sm:$0xff]
        %v1372 = vld [vmem:[#allocation2 + $0xd0] sm:$0xff]
        %v1373 = vld [vmem:[#allocation2 + $0xd8] sm:$0xff]
        %v1374 = vld [vmem:[#allocation2 + $0xe0] sm:$0xff]
        %v1375 = vld [vmem:[#allocation2 + $0xe8] sm:$0xff]
        %v1376 = vld [vmem:[#allocation2 + $0xf0] sm:$0xff]
        %v1377 = vld [vmem:[#allocation2 + $0xf8] sm:$0xff]
        %v1378 = vadd.f32 %v1346, %v1188
        %v1379 = vadd.f32 %v1347, %v1193
        %v1380 = vadd.f32 %v1348, %v1198
        %v1381 = vadd.f32 %v1349, %v1203
        %v1382 = vadd.f32 %v1350, %v1208
        %v1383 = vadd.f32 %v1351, %v1213
        %v1384 = vadd.f32 %v1352, %v1218
        %v1385 = vadd.f32 %v1353, %v1223
        %v1386 = vadd.f32 %v1354, %v1228
        %v1387 = vadd.f32 %v1355, %v1233
        %v1388 = vadd.f32 %v1356, %v1238
        %v1389 = vadd.f32 %v1357, %v1243
        %v1390 = vadd.f32 %v1358, %v1248
        %v1391 = vadd.f32 %v1359, %v1253
        %v1392 = vadd.f32 %v1360, %v1258
        %v1393 = vadd.f32 %v1361, %v1263
        %v1394 = vadd.f32 %v1362, %v1268
        %v1395 = vadd.f32 %v1363, %v1273
        %v1396 = vadd.f32 %v1364, %v1278
        %v1397 = vadd.f32 %v1365, %v1283
        %v1398 = vadd.f32 %v1366, %v1288
        %v1399 = vadd.f32 %v1367, %v1293
        %v1400 = vadd.f32 %v1368, %v1298
        %v1401 = vadd.f32 %v1369, %v1303
        %v1402 = vadd.f32 %v1370, %v1308
        %v1403 = vadd.f32 %v1371, %v1313
        %v1404 = vadd.f32 %v1372, %v1318
        %v1405 = vadd.f32 %v1373, %v1323
        %v1406 = vadd.f32 %v1374, %v1328
        %v1407 = vadd.f32 %v1375, %v1333
        %v1408 = vadd.f32 %v1376, %v1338
        %v1409 = vadd.f32 %v1377, %v1343
        %1410 = vst [vmem:[#allocation2] sm:$0xff] %v1378
        %1411 = vst [vmem:[#allocation2 + $0x8] sm:$0xff] %v1379
        %1412 = vst [vmem:[#allocation2 + $0x10] sm:$0xff] %v1380
        %1413 = vst [vmem:[#allocation2 + $0x18] sm:$0xff] %v1381
        %1414 = vst [vmem:[#allocation2 + $0x20] sm:$0xff] %v1382
        %1415 = vst [vmem:[#allocation2 + $0x28] sm:$0xff] %v1383
        %1416 = vst [vmem:[#allocation2 + $0x30] sm:$0xff] %v1384
        %1417 = vst [vmem:[#allocation2 + $0x38] sm:$0xff] %v1385
        %1418 = vst [vmem:[#allocation2 + $0x40] sm:$0xff] %v1386
        %1419 = vst [vmem:[#allocation2 + $0x48] sm:$0xff] %v1387
        %1420 = vst [vmem:[#allocation2 + $0x50] sm:$0xff] %v1388
        %1421 = vst [vmem:[#allocation2 + $0x58] sm:$0xff] %v1389
        %1422 = vst [vmem:[#allocation2 + $0x60] sm:$0xff] %v1390
        %1423 = vst [vmem:[#allocation2 + $0x68] sm:$0xff] %v1391
        %1424 = vst [vmem:[#allocation2 + $0x70] sm:$0xff] %v1392
        %1425 = vst [vmem:[#allocation2 + $0x78] sm:$0xff] %v1393
        %1426 = vst [vmem:[#allocation2 + $0x80] sm:$0xff] %v1394
        %1427 = vst [vmem:[#allocation2 + $0x88] sm:$0xff] %v1395
        %1428 = vst [vmem:[#allocation2 + $0x90] sm:$0xff] %v1396
        %1429 = vst [vmem:[#allocation2 + $0x98] sm:$0xff] %v1397
        %1430 = vst [vmem:[#allocation2 + $0xa0] sm:$0xff] %v1398
        %1431 = vst [vmem:[#allocation2 + $0xa8] sm:$0xff] %v1399
        %1432 = vst [vmem:[#allocation2 + $0xb0] sm:$0xff] %v1400
        %1433 = vst [vmem:[#allocation2 + $0xb8] sm:$0xff] %v1401
        %1434 = vst [vmem:[#allocation2 + $0xc0] sm:$0xff] %v1402
        %1435 = vst [vmem:[#allocation2 + $0xc8] sm:$0xff] %v1403
        %1436 = vst [vmem:[#allocation2 + $0xd0] sm:$0xff] %v1404
        %1437 = vst [vmem:[#allocation2 + $0xd8] sm:$0xff] %v1405
        %1438 = vst [vmem:[#allocation2 + $0xe0] sm:$0xff] %v1406
        %1439 = vst [vmem:[#allocation2 + $0xe8] sm:$0xff] %v1407
        %1440 = vst [vmem:[#allocation2 + $0xf0] sm:$0xff] %v1408
        %1441 = vst [vmem:[#allocation2 + $0xf8] sm:$0xff] %v1409
        %v1442 = vld [vmem:[%s987 + $0x1] sm:$0xff]
        %v1443 = vld [vmem:[%s987 + $0x9] sm:$0xff]
        %v1444 = vld [vmem:[%s987 + $0x19] sm:$0xff]
        %v1445 = vld [vmem:[%s987 + $0x21] sm:$0xff]
        %v1446 = vld [vmem:[%s987 + $0x31] sm:$0xff]
        %v1447 = vld [vmem:[%s987 + $0x39] sm:$0xff]
        %v1448 = vld [vmem:[%s987 + $0x49] sm:$0xff]
        %v1449 = vld [vmem:[%s987 + $0x51] sm:$0xff]
        %v1450 = vld [vmem:[%s987 + $0x61] sm:$0xff]
        %v1451 = vld [vmem:[%s987 + $0x69] sm:$0xff]
        %v1452 = vld [vmem:[%s987 + $0x79] sm:$0xff]
        %v1453 = vld [vmem:[%s987 + $0x81] sm:$0xff]
        %v1454 = vld [vmem:[%s987 + $0x91] sm:$0xff]
        %v1455 = vld [vmem:[%s987 + $0x99] sm:$0xff]
        %v1456 = vld [vmem:[%s987 + $0xa9] sm:$0xff]
        %v1457 = vld [vmem:[%s987 + $0xb1] sm:$0xff]
        %v1458 = vld [vmem:[%s987 + $0xc1] sm:$0xff]
        %v1459 = vld [vmem:[%s987 + $0xc9] sm:$0xff]
        %v1460 = vld [vmem:[%s987 + $0xd9] sm:$0xff]
        %v1461 = vld [vmem:[%s987 + $0xe1] sm:$0xff]
        %v1462 = vld [vmem:[%s987 + $0xf1] sm:$0xff]
        %v1463 = vld [vmem:[%s987 + $0xf9] sm:$0xff]
        %v1464 = vld [vmem:[%s987 + $0x109] sm:$0xff]
        %v1465 = vld [vmem:[%s987 + $0x111] sm:$0xff]
        %v1466 = vld [vmem:[%s987 + $0x121] sm:$0xff]
        %v1467 = vld [vmem:[%s987 + $0x129] sm:$0xff]
        %v1468 = vld [vmem:[%s987 + $0x139] sm:$0xff]
        %v1469 = vld [vmem:[%s987 + $0x141] sm:$0xff]
        %v1470 = vld [vmem:[%s987 + $0x151] sm:$0xff]
        %v1471 = vld [vmem:[%s987 + $0x159] sm:$0xff]
        %v1472 = vld [vmem:[%s987 + $0x169] sm:$0xff]
        %v1473 = vld [vmem:[%s987 + $0x171] sm:$0xff]
        %s1474 = scalar_lea.vmem %s1, 12
        %v1475 = vld [vmem:[%s1474] sm:$0xf]
        %v1477 = vsel %vm175, %v1442, 0
        %v1480 = vsel %vm175, %v1443, 0
        %v1483 = vsel %vm175, %v1444, 0
        %v1486 = vsel %vm175, %v1445, 0
        %v1489 = vsel %vm175, %v1446, 0
        %v1492 = vsel %vm175, %v1447, 0
        %v1495 = vsel %vm175, %v1448, 0
        %v1498 = vsel %vm175, %v1449, 0
        %v1501 = vsel %vm175, %v1450, 0
        %v1504 = vsel %vm175, %v1451, 0
        %v1507 = vsel %vm175, %v1452, 0
        %v1510 = vsel %vm175, %v1453, 0
        %v1513 = vsel %vm175, %v1454, 0
        %v1516 = vsel %vm175, %v1455, 0
        %v1519 = vsel %vm175, %v1456, 0
        %v1522 = vsel %vm175, %v1457, 0
        %v1525 = vsel %vm175, %v1458, 0
        %v1528 = vsel %vm175, %v1459, 0
        %v1531 = vsel %vm175, %v1460, 0
        %v1534 = vsel %vm175, %v1461, 0
        %v1537 = vsel %vm175, %v1462, 0
        %v1540 = vsel %vm175, %v1463, 0
        %v1543 = vsel %vm175, %v1464, 0
        %v1546 = vsel %vm175, %v1465, 0
        %v1549 = vsel %vm175, %v1466, 0
        %v1552 = vsel %vm175, %v1467, 0
        %v1555 = vsel %vm175, %v1468, 0
        %v1558 = vsel %vm175, %v1469, 0
        %v1561 = vsel %vm175, %v1470, 0
        %v1564 = vsel %vm175, %v1471, 0
        %v1567 = vsel %vm175, %v1472, 0
        %v1570 = vsel %vm175, %v1473, 0
        %v1573 = vsel %vm272, %v1475, 0
        %1575 = vmatprep.subr.mxu0 0.0
        %1576 = vmatpush1.msra.mxu0 %v1573
        %1577 = vmatprep.subr.mxu0 0.0
        %1578 = vmatpush1.msra.mxu0 0.0
        %1579 = vmatprep.subr.mxu0 0.0
        %1580 = vmatpush1.msra.mxu0 0.0
        %1581 = vmatprep.subr.mxu0 0.0
        %1582 = vmatpush1.msra.mxu0 0.0
        %1583 = vmatprep.subr.mxu0 0.0
        %1584 = vmatpush1.msra.mxu0 0.0
        %1585 = vmatprep.subr.mxu0 0.0
        %1586 = vmatpush1.msra.mxu0 0.0
        %1587 = vmatprep.subr.mxu0 0.0
        %1588 = vmatpush1.msra.mxu0 0.0
        %1589 = vmatprep.subr.mxu0 0.0
        %1590 = vmatpush1.msra.mxu0 0.0
        %1591 = vmatprep.subr.mxu0 0.0
        %1592 = vmatpush1.msra.mxu0 0.0
        %1593 = vmatprep.subr.mxu0 0.0
        %1594 = vmatpush1.msra.mxu0 0.0
        %1595 = vmatprep.subr.mxu0 0.0
        %1596 = vmatpush1.msra.mxu0 0.0
        %1597 = vmatprep.subr.mxu0 0.0
        %1598 = vmatpush1.msra.mxu0 0.0
        %1599 = vmatprep.subr.mxu0 0.0
        %1600 = vmatpush1.msra.mxu0 0.0
        %1601 = vmatprep.subr.mxu0 0.0
        %1602 = vmatpush1.msra.mxu0 0.0
        %1603 = vmatprep.subr.mxu0 0.0
        %1604 = vmatpush1.msra.mxu0 0.0
        %1605 = vmatprep.subr.mxu0 0.0
        %1606 = vmatpush1.msra.mxu0 0.0
        %1607 = vmatprep.subr.mxu0 0.0
        %1608 = vmatpush1.msra.mxu0 0.0
        %1609 = vmatprep.subr.mxu0 0.0
        %1610 = vmatpush1.msra.mxu0 0.0
        %1611 = vmatprep.subr.mxu0 0.0
        %1612 = vmatpush1.msra.mxu0 0.0
        %1613 = vmatprep.subr.mxu0 0.0
        %1614 = vmatpush1.msra.mxu0 0.0
        %1615 = vmatprep.subr.mxu0 0.0
        %1616 = vmatpush1.msra.mxu0 0.0
        %1617 = vmatprep.subr.mxu0 0.0
        %1618 = vmatpush1.msra.mxu0 0.0
        %1619 = vmatprep.subr.mxu0 0.0
        %1620 = vmatpush1.msra.mxu0 0.0
        %1621 = vmatprep.subr.mxu0 0.0
        %1622 = vmatpush1.msra.mxu0 0.0
        %1623 = vmatprep.subr.mxu0 0.0
        %1624 = vmatpush1.msra.mxu0 0.0
        %1625 = vmatprep.subr.mxu0 0.0
        %1626 = vmatpush1.msra.mxu0 0.0
        %1627 = vmatprep.subr.mxu0 0.0
        %1628 = vmatpush1.msra.mxu0 0.0
        %1629 = vmatprep.subr.mxu0 0.0
        %1630 = vmatpush1.msra.mxu0 0.0
        %1631 = vmatprep.subr.mxu0 0.0
        %1632 = vmatpush1.msra.mxu0 0.0
        %1633 = vmatprep.subr.mxu0 0.0
        %1634 = vmatpush1.msra.mxu0 0.0
        %1635 = vmatprep.subr.mxu0 0.0
        %1636 = vmatpush1.msra.mxu0 0.0
        %1637 = vmatprep.subr.mxu0 0.0
        %1638 = vmatpush1.msra.mxu0 0.0
        %1639 = vmatprep.mubr.f32.mxu0 0.0
        %1640 = vmatmul.mubr.f32.gmra.mrb[0].mxu0 %v1477
        %v1641 = vpop.f32.mrb[0].mxu0
        %v1642 = vadd.f32 0.0, %v1641
        %v1643 = vpop.f32.mrb[0].mxu0
        %1644 = vmatprep.mubr.f32.mxu0 0.0
        %1645 = vmatmul.mubr.f32.gmra.mrb[0].mxu0 %v1480
        %v1646 = vpop.f32.mrb[0].mxu0
        %v1647 = vadd.f32 0.0, %v1646
        %v1648 = vpop.f32.mrb[0].mxu0
        %1649 = vmatprep.mubr.f32.mxu0 0.0
        %1650 = vmatmul.mubr.f32.gmra.mrb[0].mxu0 %v1483
        %v1651 = vpop.f32.mrb[0].mxu0
        %v1652 = vadd.f32 0.0, %v1651
        %v1653 = vpop.f32.mrb[0].mxu0
        %1654 = vmatprep.mubr.f32.mxu0 0.0
        %1655 = vmatmul.mubr.f32.gmra.mrb[0].mxu0 %v1486
        %v1656 = vpop.f32.mrb[0].mxu0
        %v1657 = vadd.f32 0.0, %v1656
        %v1658 = vpop.f32.mrb[0].mxu0
        %1659 = vmatprep.mubr.f32.mxu0 0.0
        %1660 = vmatmul.mubr.f32.gmra.mrb[0].mxu0 %v1489
        %v1661 = vpop.f32.mrb[0].mxu0
        %v1662 = vadd.f32 0.0, %v1661
        %v1663 = vpop.f32.mrb[0].mxu0
        %1664 = vmatprep.mubr.f32.mxu0 0.0
        %1665 = vmatmul.mubr.f32.gmra.mrb[0].mxu0 %v1492
        %v1666 = vpop.f32.mrb[0].mxu0
        %v1667 = vadd.f32 0.0, %v1666
        %v1668 = vpop.f32.mrb[0].mxu0
        %1669 = vmatprep.mubr.f32.mxu0 0.0
        %1670 = vmatmul.mubr.f32.gmra.mrb[0].mxu0 %v1495
        %v1671 = vpop.f32.mrb[0].mxu0
        %v1672 = vadd.f32 0.0, %v1671
        %v1673 = vpop.f32.mrb[0].mxu0
        %1674 = vmatprep.mubr.f32.mxu0 0.0
        %1675 = vmatmul.mubr.f32.gmra.mrb[0].mxu0 %v1498
        %v1676 = vpop.f32.mrb[0].mxu0
        %v1677 = vadd.f32 0.0, %v1676
        %v1678 = vpop.f32.mrb[0].mxu0
        %1679 = vmatprep.mubr.f32.mxu0 0.0
        %1680 = vmatmul.mubr.f32.gmra.mrb[0].mxu0 %v1501
        %v1681 = vpop.f32.mrb[0].mxu0
        %v1682 = vadd.f32 0.0, %v1681
        %v1683 = vpop.f32.mrb[0].mxu0
        %1684 = vmatprep.mubr.f32.mxu0 0.0
        %1685 = vmatmul.mubr.f32.gmra.mrb[0].mxu0 %v1504
        %v1686 = vpop.f32.mrb[0].mxu0
        %v1687 = vadd.f32 0.0, %v1686
        %v1688 = vpop.f32.mrb[0].mxu0
        %1689 = vmatprep.mubr.f32.mxu0 0.0
        %1690 = vmatmul.mubr.f32.gmra.mrb[0].mxu0 %v1507
        %v1691 = vpop.f32.mrb[0].mxu0
        %v1692 = vadd.f32 0.0, %v1691
        %v1693 = vpop.f32.mrb[0].mxu0
        %1694 = vmatprep.mubr.f32.mxu0 0.0
        %1695 = vmatmul.mubr.f32.gmra.mrb[0].mxu0 %v1510
        %v1696 = vpop.f32.mrb[0].mxu0
        %v1697 = vadd.f32 0.0, %v1696
        %v1698 = vpop.f32.mrb[0].mxu0
        %1699 = vmatprep.mubr.f32.mxu0 0.0
        %1700 = vmatmul.mubr.f32.gmra.mrb[0].mxu0 %v1513
        %v1701 = vpop.f32.mrb[0].mxu0
        %v1702 = vadd.f32 0.0, %v1701
        %v1703 = vpop.f32.mrb[0].mxu0
        %1704 = vmatprep.mubr.f32.mxu0 0.0
        %1705 = vmatmul.mubr.f32.gmra.mrb[0].mxu0 %v1516
        %v1706 = vpop.f32.mrb[0].mxu0
        %v1707 = vadd.f32 0.0, %v1706
        %v1708 = vpop.f32.mrb[0].mxu0
        %1709 = vmatprep.mubr.f32.mxu0 0.0
        %1710 = vmatmul.mubr.f32.gmra.mrb[0].mxu0 %v1519
        %v1711 = vpop.f32.mrb[0].mxu0
        %v1712 = vadd.f32 0.0, %v1711
        %v1713 = vpop.f32.mrb[0].mxu0
        %1714 = vmatprep.mubr.f32.mxu0 0.0
        %1715 = vmatmul.mubr.f32.gmra.mrb[0].mxu0 %v1522
        %v1716 = vpop.f32.mrb[0].mxu0
        %v1717 = vadd.f32 0.0, %v1716
        %v1718 = vpop.f32.mrb[0].mxu0
        %1719 = vmatprep.mubr.f32.mxu0 0.0
        %1720 = vmatmul.mubr.f32.gmra.mrb[0].mxu0 %v1525
        %v1721 = vpop.f32.mrb[0].mxu0
        %v1722 = vadd.f32 0.0, %v1721
        %v1723 = vpop.f32.mrb[0].mxu0
        %1724 = vmatprep.mubr.f32.mxu0 0.0
        %1725 = vmatmul.mubr.f32.gmra.mrb[0].mxu0 %v1528
        %v1726 = vpop.f32.mrb[0].mxu0
        %v1727 = vadd.f32 0.0, %v1726
        %v1728 = vpop.f32.mrb[0].mxu0
        %1729 = vmatprep.mubr.f32.mxu0 0.0
        %1730 = vmatmul.mubr.f32.gmra.mrb[0].mxu0 %v1531
        %v1731 = vpop.f32.mrb[0].mxu0
        %v1732 = vadd.f32 0.0, %v1731
        %v1733 = vpop.f32.mrb[0].mxu0
        %1734 = vmatprep.mubr.f32.mxu0 0.0
        %1735 = vmatmul.mubr.f32.gmra.mrb[0].mxu0 %v1534
        %v1736 = vpop.f32.mrb[0].mxu0
        %v1737 = vadd.f32 0.0, %v1736
        %v1738 = vpop.f32.mrb[0].mxu0
        %1739 = vmatprep.mubr.f32.mxu0 0.0
        %1740 = vmatmul.mubr.f32.gmra.mrb[0].mxu0 %v1537
        %v1741 = vpop.f32.mrb[0].mxu0
        %v1742 = vadd.f32 0.0, %v1741
        %v1743 = vpop.f32.mrb[0].mxu0
        %1744 = vmatprep.mubr.f32.mxu0 0.0
        %1745 = vmatmul.mubr.f32.gmra.mrb[0].mxu0 %v1540
        %v1746 = vpop.f32.mrb[0].mxu0
        %v1747 = vadd.f32 0.0, %v1746
        %v1748 = vpop.f32.mrb[0].mxu0
        %1749 = vmatprep.mubr.f32.mxu0 0.0
        %1750 = vmatmul.mubr.f32.gmra.mrb[0].mxu0 %v1543
        %v1751 = vpop.f32.mrb[0].mxu0
        %v1752 = vadd.f32 0.0, %v1751
        %v1753 = vpop.f32.mrb[0].mxu0
        %1754 = vmatprep.mubr.f32.mxu0 0.0
        %1755 = vmatmul.mubr.f32.gmra.mrb[0].mxu0 %v1546
        %v1756 = vpop.f32.mrb[0].mxu0
        %v1757 = vadd.f32 0.0, %v1756
        %v1758 = vpop.f32.mrb[0].mxu0
        %1759 = vmatprep.mubr.f32.mxu0 0.0
        %1760 = vmatmul.mubr.f32.gmra.mrb[0].mxu0 %v1549
        %v1761 = vpop.f32.mrb[0].mxu0
        %v1762 = vadd.f32 0.0, %v1761
        %v1763 = vpop.f32.mrb[0].mxu0
        %1764 = vmatprep.mubr.f32.mxu0 0.0
        %1765 = vmatmul.mubr.f32.gmra.mrb[0].mxu0 %v1552
        %v1766 = vpop.f32.mrb[0].mxu0
        %v1767 = vadd.f32 0.0, %v1766
        %v1768 = vpop.f32.mrb[0].mxu0
        %1769 = vmatprep.mubr.f32.mxu0 0.0
        %1770 = vmatmul.mubr.f32.gmra.mrb[0].mxu0 %v1555
        %v1771 = vpop.f32.mrb[0].mxu0
        %v1772 = vadd.f32 0.0, %v1771
        %v1773 = vpop.f32.mrb[0].mxu0
        %1774 = vmatprep.mubr.f32.mxu0 0.0
        %1775 = vmatmul.mubr.f32.gmra.mrb[0].mxu0 %v1558
        %v1776 = vpop.f32.mrb[0].mxu0
        %v1777 = vadd.f32 0.0, %v1776
        %v1778 = vpop.f32.mrb[0].mxu0
        %1779 = vmatprep.mubr.f32.mxu0 0.0
        %1780 = vmatmul.mubr.f32.gmra.mrb[0].mxu0 %v1561
        %v1781 = vpop.f32.mrb[0].mxu0
        %v1782 = vadd.f32 0.0, %v1781
        %v1783 = vpop.f32.mrb[0].mxu0
        %1784 = vmatprep.mubr.f32.mxu0 0.0
        %1785 = vmatmul.mubr.f32.gmra.mrb[0].mxu0 %v1564
        %v1786 = vpop.f32.mrb[0].mxu0
        %v1787 = vadd.f32 0.0, %v1786
        %v1788 = vpop.f32.mrb[0].mxu0
        %1789 = vmatprep.mubr.f32.mxu0 0.0
        %1790 = vmatmul.mubr.f32.gmra.mrb[0].mxu0 %v1567
        %v1791 = vpop.f32.mrb[0].mxu0
        %v1792 = vadd.f32 0.0, %v1791
        %v1793 = vpop.f32.mrb[0].mxu0
        %1794 = vmatprep.mubr.f32.mxu0 0.0
        %1795 = vmatmul.mubr.f32.gmra.mrb[0].mxu0 %v1570
        %v1796 = vpop.f32.mrb[0].mxu0
        %v1797 = vadd.f32 0.0, %v1796
        %v1798 = vpop.f32.mrb[0].mxu0
        %1799 = vdwg.mxu0
        %v1800 = vld [vmem:[#allocation2] sm:$0xff]
        %v1801 = vld [vmem:[#allocation2 + $0x8] sm:$0xff]
        %v1802 = vld [vmem:[#allocation2 + $0x10] sm:$0xff]
        %v1803 = vld [vmem:[#allocation2 + $0x18] sm:$0xff]
        %v1804 = vld [vmem:[#allocation2 + $0x20] sm:$0xff]
        %v1805 = vld [vmem:[#allocation2 + $0x28] sm:$0xff]
        %v1806 = vld [vmem:[#allocation2 + $0x30] sm:$0xff]
        %v1807 = vld [vmem:[#allocation2 + $0x38] sm:$0xff]
        %v1808 = vld [vmem:[#allocation2 + $0x40] sm:$0xff]
        %v1809 = vld [vmem:[#allocation2 + $0x48] sm:$0xff]
        %v1810 = vld [vmem:[#allocation2 + $0x50] sm:$0xff]
        %v1811 = vld [vmem:[#allocation2 + $0x58] sm:$0xff]
        %v1812 = vld [vmem:[#allocation2 + $0x60] sm:$0xff]
        %v1813 = vld [vmem:[#allocation2 + $0x68] sm:$0xff]
        %v1814 = vld [vmem:[#allocation2 + $0x70] sm:$0xff]
        %v1815 = vld [vmem:[#allocation2 + $0x78] sm:$0xff]
        %v1816 = vld [vmem:[#allocation2 + $0x80] sm:$0xff]
        %v1817 = vld [vmem:[#allocation2 + $0x88] sm:$0xff]
        %v1818 = vld [vmem:[#allocation2 + $0x90] sm:$0xff]
        %v1819 = vld [vmem:[#allocation2 + $0x98] sm:$0xff]
        %v1820 = vld [vmem:[#allocation2 + $0xa0] sm:$0xff]
        %v1821 = vld [vmem:[#allocation2 + $0xa8] sm:$0xff]
        %v1822 = vld [vmem:[#allocation2 + $0xb0] sm:$0xff]
        %v1823 = vld [vmem:[#allocation2 + $0xb8] sm:$0xff]
        %v1824 = vld [vmem:[#allocation2 + $0xc0] sm:$0xff]
        %v1825 = vld [vmem:[#allocation2 + $0xc8] sm:$0xff]
        %v1826 = vld [vmem:[#allocation2 + $0xd0] sm:$0xff]
        %v1827 = vld [vmem:[#allocation2 + $0xd8] sm:$0xff]
        %v1828 = vld [vmem:[#allocation2 + $0xe0] sm:$0xff]
        %v1829 = vld [vmem:[#allocation2 + $0xe8] sm:$0xff]
        %v1830 = vld [vmem:[#allocation2 + $0xf0] sm:$0xff]
        %v1831 = vld [vmem:[#allocation2 + $0xf8] sm:$0xff]
        %v1832 = vadd.f32 %v1800, %v1642
        %v1833 = vadd.f32 %v1801, %v1647
        %v1834 = vadd.f32 %v1802, %v1652
        %v1835 = vadd.f32 %v1803, %v1657
        %v1836 = vadd.f32 %v1804, %v1662
        %v1837 = vadd.f32 %v1805, %v1667
        %v1838 = vadd.f32 %v1806, %v1672
        %v1839 = vadd.f32 %v1807, %v1677
        %v1840 = vadd.f32 %v1808, %v1682
        %v1841 = vadd.f32 %v1809, %v1687
        %v1842 = vadd.f32 %v1810, %v1692
        %v1843 = vadd.f32 %v1811, %v1697
        %v1844 = vadd.f32 %v1812, %v1702
        %v1845 = vadd.f32 %v1813, %v1707
        %v1846 = vadd.f32 %v1814, %v1712
        %v1847 = vadd.f32 %v1815, %v1717
        %v1848 = vadd.f32 %v1816, %v1722
        %v1849 = vadd.f32 %v1817, %v1727
        %v1850 = vadd.f32 %v1818, %v1732
        %v1851 = vadd.f32 %v1819, %v1737
        %v1852 = vadd.f32 %v1820, %v1742
        %v1853 = vadd.f32 %v1821, %v1747
        %v1854 = vadd.f32 %v1822, %v1752
        %v1855 = vadd.f32 %v1823, %v1757
        %v1856 = vadd.f32 %v1824, %v1762
        %v1857 = vadd.f32 %v1825, %v1767
        %v1858 = vadd.f32 %v1826, %v1772
        %v1859 = vadd.f32 %v1827, %v1777
        %v1860 = vadd.f32 %v1828, %v1782
        %v1861 = vadd.f32 %v1829, %v1787
        %v1862 = vadd.f32 %v1830, %v1792
        %v1863 = vadd.f32 %v1831, %v1797
        %1864 = vst [vmem:[#allocation2] sm:$0xff] %v1832
        %1865 = vst [vmem:[#allocation2 + $0x8] sm:$0xff] %v1833
        %1866 = vst [vmem:[#allocation2 + $0x10] sm:$0xff] %v1834
        %1867 = vst [vmem:[#allocation2 + $0x18] sm:$0xff] %v1835
        %1868 = vst [vmem:[#allocation2 + $0x20] sm:$0xff] %v1836
        %1869 = vst [vmem:[#allocation2 + $0x28] sm:$0xff] %v1837
        %1870 = vst [vmem:[#allocation2 + $0x30] sm:$0xff] %v1838
        %1871 = vst [vmem:[#allocation2 + $0x38] sm:$0xff] %v1839
        %1872 = vst [vmem:[#allocation2 + $0x40] sm:$0xff] %v1840
        %1873 = vst [vmem:[#allocation2 + $0x48] sm:$0xff] %v1841
        %1874 = vst [vmem:[#allocation2 + $0x50] sm:$0xff] %v1842
        %1875 = vst [vmem:[#allocation2 + $0x58] sm:$0xff] %v1843
        %1876 = vst [vmem:[#allocation2 + $0x60] sm:$0xff] %v1844
        %1877 = vst [vmem:[#allocation2 + $0x68] sm:$0xff] %v1845
        %1878 = vst [vmem:[#allocation2 + $0x70] sm:$0xff] %v1846
        %1879 = vst [vmem:[#allocation2 + $0x78] sm:$0xff] %v1847
        %1880 = vst [vmem:[#allocation2 + $0x80] sm:$0xff] %v1848
        %1881 = vst [vmem:[#allocation2 + $0x88] sm:$0xff] %v1849
        %1882 = vst [vmem:[#allocation2 + $0x90] sm:$0xff] %v1850
        %1883 = vst [vmem:[#allocation2 + $0x98] sm:$0xff] %v1851
        %1884 = vst [vmem:[#allocation2 + $0xa0] sm:$0xff] %v1852
        %1885 = vst [vmem:[#allocation2 + $0xa8] sm:$0xff] %v1853
        %1886 = vst [vmem:[#allocation2 + $0xb0] sm:$0xff] %v1854
        %1887 = vst [vmem:[#allocation2 + $0xb8] sm:$0xff] %v1855
        %1888 = vst [vmem:[#allocation2 + $0xc0] sm:$0xff] %v1856
        %1889 = vst [vmem:[#allocation2 + $0xc8] sm:$0xff] %v1857
        %1890 = vst [vmem:[#allocation2 + $0xd0] sm:$0xff] %v1858
        %1891 = vst [vmem:[#allocation2 + $0xd8] sm:$0xff] %v1859
        %1892 = vst [vmem:[#allocation2 + $0xe0] sm:$0xff] %v1860
        %1893 = vst [vmem:[#allocation2 + $0xe8] sm:$0xff] %v1861
        %1894 = vst [vmem:[#allocation2 + $0xf0] sm:$0xff] %v1862
        %1895 = vst [vmem:[#allocation2 + $0xf8] sm:$0xff] %v1863
        %v1896 = vld [vmem:[#allocation2] sm:$0xff]
        %v1897 = vld [vmem:[#allocation2 + $0x8] sm:$0xff]
        %v1898 = vld [vmem:[#allocation2 + $0x10] sm:$0xff]
        %v1899 = vld [vmem:[#allocation2 + $0x18] sm:$0xff]
        %v1900 = vld [vmem:[#allocation2 + $0x20] sm:$0xff]
        %v1901 = vld [vmem:[#allocation2 + $0x28] sm:$0xff]
        %v1902 = vld [vmem:[#allocation2 + $0x30] sm:$0xff]
        %v1903 = vld [vmem:[#allocation2 + $0x38] sm:$0xff]
        %v1904 = vld [vmem:[#allocation2 + $0x40] sm:$0xff]
        %v1905 = vld [vmem:[#allocation2 + $0x48] sm:$0xff]
        %v1906 = vld [vmem:[#allocation2 + $0x50] sm:$0xff]
        %v1907 = vld [vmem:[#allocation2 + $0x58] sm:$0xff]
        %v1908 = vld [vmem:[#allocation2 + $0x60] sm:$0xff]
        %v1909 = vld [vmem:[#allocation2 + $0x68] sm:$0xff]
        %v1910 = vld [vmem:[#allocation2 + $0x70] sm:$0xff]
        %v1911 = vld [vmem:[#allocation2 + $0x78] sm:$0xff]
        %v1912 = vld [vmem:[#allocation2 + $0x80] sm:$0xff]
        %v1913 = vld [vmem:[#allocation2 + $0x88] sm:$0xff]
        %v1914 = vld [vmem:[#allocation2 + $0x90] sm:$0xff]
        %v1915 = vld [vmem:[#allocation2 + $0x98] sm:$0xff]
        %v1916 = vld [vmem:[#allocation2 + $0xa0] sm:$0xff]
        %v1917 = vld [vmem:[#allocation2 + $0xa8] sm:$0xff]
        %v1918 = vld [vmem:[#allocation2 + $0xb0] sm:$0xff]
        %v1919 = vld [vmem:[#allocation2 + $0xb8] sm:$0xff]
        %v1920 = vld [vmem:[#allocation2 + $0xc0] sm:$0xff]
        %v1921 = vld [vmem:[#allocation2 + $0xc8] sm:$0xff]
        %v1922 = vld [vmem:[#allocation2 + $0xd0] sm:$0xff]
        %v1923 = vld [vmem:[#allocation2 + $0xd8] sm:$0xff]
        %v1924 = vld [vmem:[#allocation2 + $0xe0] sm:$0xff]
        %v1925 = vld [vmem:[#allocation2 + $0xe8] sm:$0xff]
        %v1926 = vld [vmem:[#allocation2 + $0xf0] sm:$0xff]
        %v1927 = vld [vmem:[#allocation2 + $0xf8] sm:$0xff]
        %vm1928 = vcmp.gt.f32.partialorder %v1896, 0.0
        %vm1929 = vcmp.gt.f32.partialorder %v1897, 0.0
        %vm1930 = vcmp.gt.f32.partialorder %v1898, 0.0
        %vm1931 = vcmp.gt.f32.partialorder %v1899, 0.0
        %vm1932 = vcmp.gt.f32.partialorder %v1900, 0.0
        %vm1933 = vcmp.gt.f32.partialorder %v1901, 0.0
        %vm1934 = vcmp.gt.f32.partialorder %v1902, 0.0
        %vm1935 = vcmp.gt.f32.partialorder %v1903, 0.0
        %vm1936 = vcmp.gt.f32.partialorder %v1904, 0.0
        %vm1937 = vcmp.gt.f32.partialorder %v1905, 0.0
        %vm1938 = vcmp.gt.f32.partialorder %v1906, 0.0
        %vm1939 = vcmp.gt.f32.partialorder %v1907, 0.0
        %vm1940 = vcmp.gt.f32.partialorder %v1908, 0.0
        %vm1941 = vcmp.gt.f32.partialorder %v1909, 0.0
        %vm1942 = vcmp.gt.f32.partialorder %v1910, 0.0
        %vm1943 = vcmp.gt.f32.partialorder %v1911, 0.0
        %vm1944 = vcmp.gt.f32.partialorder %v1912, 0.0
        %vm1945 = vcmp.gt.f32.partialorder %v1913, 0.0
        %vm1946 = vcmp.gt.f32.partialorder %v1914, 0.0
        %vm1947 = vcmp.gt.f32.partialorder %v1915, 0.0
        %vm1948 = vcmp.gt.f32.partialorder %v1916, 0.0
        %vm1949 = vcmp.gt.f32.partialorder %v1917, 0.0
        %vm1950 = vcmp.gt.f32.partialorder %v1918, 0.0
        %vm1951 = vcmp.gt.f32.partialorder %v1919, 0.0
        %vm1952 = vcmp.gt.f32.partialorder %v1920, 0.0
        %vm1953 = vcmp.gt.f32.partialorder %v1921, 0.0
        %vm1954 = vcmp.gt.f32.partialorder %v1922, 0.0
        %vm1955 = vcmp.gt.f32.partialorder %v1923, 0.0
        %vm1956 = vcmp.gt.f32.partialorder %v1924, 0.0
        %vm1957 = vcmp.gt.f32.partialorder %v1925, 0.0
        %vm1958 = vcmp.gt.f32.partialorder %v1926, 0.0
        %vm1959 = vcmp.gt.f32.partialorder %v1927, 0.0
        %v1960 = vmul.f32 %v1896, 0.2
        %v1961 = vmul.f32 %v1897, 0.2
        %v1962 = vmul.f32 %v1898, 0.2
        %v1963 = vmul.f32 %v1899, 0.2
        %v1964 = vmul.f32 %v1900, 0.2
        %v1965 = vmul.f32 %v1901, 0.2
        %v1966 = vmul.f32 %v1902, 0.2
        %v1967 = vmul.f32 %v1903, 0.2
        %v1968 = vmul.f32 %v1904, 0.2
        %v1969 = vmul.f32 %v1905, 0.2
        %v1970 = vmul.f32 %v1906, 0.2
        %v1971 = vmul.f32 %v1907, 0.2
        %v1972 = vmul.f32 %v1908, 0.2
        %v1973 = vmul.f32 %v1909, 0.2
        %v1974 = vmul.f32 %v1910, 0.2
        %v1975 = vmul.f32 %v1911, 0.2
        %v1976 = vmul.f32 %v1912, 0.2
        %v1977 = vmul.f32 %v1913, 0.2
        %v1978 = vmul.f32 %v1914, 0.2
        %v1979 = vmul.f32 %v1915, 0.2
        %v1980 = vmul.f32 %v1916, 0.2
        %v1981 = vmul.f32 %v1917, 0.2
        %v1982 = vmul.f32 %v1918, 0.2
        %v1983 = vmul.f32 %v1919, 0.2
        %v1984 = vmul.f32 %v1920, 0.2
        %v1985 = vmul.f32 %v1921, 0.2
        %v1986 = vmul.f32 %v1922, 0.2
        %v1987 = vmul.f32 %v1923, 0.2
        %v1988 = vmul.f32 %v1924, 0.2
        %v1989 = vmul.f32 %v1925, 0.2
        %v1990 = vmul.f32 %v1926, 0.2
        %v1991 = vmul.f32 %v1927, 0.2
        %v1992 = vsel %vm1928, %v1896, %v1960
        %v1993 = vsel %vm1929, %v1897, %v1961
        %v1994 = vsel %vm1930, %v1898, %v1962
        %v1995 = vsel %vm1931, %v1899, %v1963
        %v1996 = vsel %vm1932, %v1900, %v1964
        %v1997 = vsel %vm1933, %v1901, %v1965
        %v1998 = vsel %vm1934, %v1902, %v1966
        %v1999 = vsel %vm1935, %v1903, %v1967
        %v2000 = vsel %vm1936, %v1904, %v1968
        %v2001 = vsel %vm1937, %v1905, %v1969
        %v2002 = vsel %vm1938, %v1906, %v1970
        %v2003 = vsel %vm1939, %v1907, %v1971
        %v2004 = vsel %vm1940, %v1908, %v1972
        %v2005 = vsel %vm1941, %v1909, %v1973
        %v2006 = vsel %vm1942, %v1910, %v1974
        %v2007 = vsel %vm1943, %v1911, %v1975
        %v2008 = vsel %vm1944, %v1912, %v1976
        %v2009 = vsel %vm1945, %v1913, %v1977
        %v2010 = vsel %vm1946, %v1914, %v1978
        %v2011 = vsel %vm1947, %v1915, %v1979
        %v2012 = vsel %vm1948, %v1916, %v1980
        %v2013 = vsel %vm1949, %v1917, %v1981
        %v2014 = vsel %vm1950, %v1918, %v1982
        %v2015 = vsel %vm1951, %v1919, %v1983
        %v2016 = vsel %vm1952, %v1920, %v1984
        %v2017 = vsel %vm1953, %v1921, %v1985
        %v2018 = vsel %vm1954, %v1922, %v1986
        %v2019 = vsel %vm1955, %v1923, %v1987
        %v2020 = vsel %vm1956, %v1924, %v1988
        %v2021 = vsel %vm1957, %v1925, %v1989
        %v2022 = vsel %vm1958, %v1926, %v1990
        %v2023 = vsel %vm1959, %v1927, %v1991
        %2024 = vst [vmem:[%s136] sm:$0xff] %v1992
        %2025 = vst [vmem:[%s136 + $0x8] sm:$0xff] %v1993
        %2026 = vst [vmem:[%s136 + $0x10] sm:$0xff] %v1994
        %2027 = vst [vmem:[%s136 + $0x18] sm:$0xff] %v1995
        %2028 = vst [vmem:[%s136 + $0x20] sm:$0xff] %v1996
        %2029 = vst [vmem:[%s136 + $0x28] sm:$0xff] %v1997
        %2030 = vst [vmem:[%s136 + $0x30] sm:$0xff] %v1998
        %2031 = vst [vmem:[%s136 + $0x38] sm:$0xff] %v1999
        %2032 = vst [vmem:[%s136 + $0x40] sm:$0xff] %v2000
        %2033 = vst [vmem:[%s136 + $0x48] sm:$0xff] %v2001
        %2034 = vst [vmem:[%s136 + $0x50] sm:$0xff] %v2002
        %2035 = vst [vmem:[%s136 + $0x58] sm:$0xff] %v2003
        %2036 = vst [vmem:[%s136 + $0x60] sm:$0xff] %v2004
        %2037 = vst [vmem:[%s136 + $0x68] sm:$0xff] %v2005
        %2038 = vst [vmem:[%s136 + $0x70] sm:$0xff] %v2006
        %2039 = vst [vmem:[%s136 + $0x78] sm:$0xff] %v2007
        %2040 = vst [vmem:[%s136 + $0x80] sm:$0xff] %v2008
        %2041 = vst [vmem:[%s136 + $0x88] sm:$0xff] %v2009
        %2042 = vst [vmem:[%s136 + $0x90] sm:$0xff] %v2010
        %2043 = vst [vmem:[%s136 + $0x98] sm:$0xff] %v2011
        %2044 = vst [vmem:[%s136 + $0xa0] sm:$0xff] %v2012
        %2045 = vst [vmem:[%s136 + $0xa8] sm:$0xff] %v2013
        %2046 = vst [vmem:[%s136 + $0xb0] sm:$0xff] %v2014
        %2047 = vst [vmem:[%s136 + $0xb8] sm:$0xff] %v2015
        %2048 = vst [vmem:[%s136 + $0xc0] sm:$0xff] %v2016
        %2049 = vst [vmem:[%s136 + $0xc8] sm:$0xff] %v2017
        %2050 = vst [vmem:[%s136 + $0xd0] sm:$0xff] %v2018
        %2051 = vst [vmem:[%s136 + $0xd8] sm:$0xff] %v2019
        %2052 = vst [vmem:[%s136 + $0xe0] sm:$0xff] %v2020
        %2053 = vst [vmem:[%s136 + $0xe8] sm:$0xff] %v2021
        %2054 = vst [vmem:[%s136 + $0xf0] sm:$0xff] %v2022
        %2055 = vst [vmem:[%s136 + $0xf8] sm:$0xff] %v2023
        %s2056 = sand.u32 %s71, 1
        %s2057 = scalar_lea.sflag [#allocation4], %s2056
        %s2058 = sand.u32 %s71, 1
        %s2059 = smul.addr %s2058, 256
        %s2060 = scalar_lea.vmem [#allocation3], %s2059
        // Predicated region
        $region29: #{tpu_custom_call.1} parent=27 // pred_check
          %p2061 = pneg %p81
        $region30: #{tpu_custom_call.1} parent=27 // pred_check_branch
          %2063 = sbr.rel (%p2061) target = $region32
        $region31: #{tpu_custom_call.1} parent=27 // pred_region
          %s2065 = ssub.s32 4096, 4096
          %2066 = vsyncadd %s2057, %s2065
          %s2067 = smul.addr %s16, 32
          %s2068 = smul.addr %s2067, 128
          %s2069 = scalar_lea.hbm %s2, %s2068
          %s2070 = sshll.u32 %s2060, 4
          %s2071 = int_to_ptr.vmem [resolvable:$true] %s2070
          %2076 = dma.vmem_to_hbm [thread:$0]  %s2071, 4096, %s2069, %s2057, 128, 128, 8
        $region32: #{tpu_custom_call.1} parent=27 // pred_fallthru
          _
      $region28: #{tpu_custom_call.1} parent=5 // pred_fallthru
        _
      %p2077 = scmp.le.s32.totalorder 2, %s11
      // Predicated region
      $region33: #{tpu_custom_call.1} parent=5 // pred_check
        %p2078 = pneg %p2077
      $region34: #{tpu_custom_call.1} parent=5 // pred_check_branch
        %2080 = sbr.rel (%p2078) target = $region36
      $region35: #{tpu_custom_call.1} parent=5 // pred_region
        %s2081 = ssub.s32 %s11, 2
        // Predicated region
        $region37: #{tpu_custom_call.1} parent=35 // pred_check
          %p2082 = pneg %p87
        $region38: #{tpu_custom_call.1} parent=35 // pred_check_branch
          %2084 = sbr.rel (%p2082) target = $region40
        $region39: #{tpu_custom_call.1} parent=35 // pred_region
          %s2085 = sand.u32 %s72, 1
          %s2086 = scalar_lea.sflag [#allocation4], %s2085
          %s2087 = sand.u32 %s72, 1
          %s2088 = smul.addr %s2087, 256
          %s2089 = scalar_lea.vmem [#allocation3], %s2088
          %2090 = dma.done %s2086, 4096
        $region40: #{tpu_custom_call.1} parent=35 // pred_fallthru
          _
      $region36: #{tpu_custom_call.1} parent=5 // pred_fallthru
        _
    $region6: #{tpu_custom_call.1} parent=1 // loop_footer
      %s15 = sadd.s32 1, %s11
    $region7: #{tpu_custom_call.1} parent=1 // loop_footer_branch
      %10 = sbr.rel target = $region3
    $region8: #{tpu_custom_call.1} parent=1 // loop_exit
      _
    %2091 = vsyncpa [#allocation4], 1
    %s2092 = scalar_lea.sflag [#allocation4], 1
    %2093 = vsyncpa %s2092, 1

</llo_original>
